<compile_context>
chip_gen: v7x
topology: tpu7x:2x2x1
jax: 0.10.0
libtpu: 0.0.40
codegen_flags: <defaults>
</compile_context>

<pallas_src>
import jax
import jax.numpy as jnp
from jax import lax
from jax.experimental import pallas as pl
from jax.experimental.pallas import tpu as pltpu

EPS = 1e-5  # PyTorch BatchNorm1d default eps


def _bn_relu(x2d, g_ref, b_ref):
    """Training-mode BatchNorm1d (biased var) + ReLU.

    Uses centered variance E[(x-mean)^2] (two reductions) instead of
    E[x^2]-E[x]^2 to avoid catastrophic cancellation for large-mean inputs.
    """
    inv_m = 1.0 / x2d.shape[0]
    mean = jnp.sum(x2d, axis=0, keepdims=True) * inv_m
    d = x2d - mean
    var = jnp.sum(d * d, axis=0, keepdims=True) * inv_m
    scale = g_ref[...] * lax.rsqrt(var + EPS)
    return jnp.maximum(d * scale + b_ref[...], 0.0)


def up_conv_kernel(x1u_ref, x2_ref,
                   w_up_ref, b_up_ref,
                   g1a_ref, be1a_ref, g1b_ref, be1b_ref,
                   w1_ref, bc1_ref,
                   g2_ref, be2_ref, w2_ref, bc2_ref,
                   wres_ref, bres_ref,
                   out_ref,
                   pad_ref):
    N, L2, Cin = x1u_ref.shape
    Ch = x2_ref.shape[2]           # = Cin // 2
    Cout = out_ref.shape[2]
    M2 = N * L2

    def conv3(x_bf, c, w_ref, b_ref):
        # 3-tap Conv1d (stride 1, pad 1) as three accumulating matmuls with K = c.
        # Weight rows are laid out [tap0 | tap1 | tap2], each (c, Cout).
        pad_ref[:, pl.ds(1, L2), 0:c] = x_bf.reshape(N, L2, c)
        acc = jnp.dot(x_bf, w_ref[c:2 * c, :],
                      preferred_element_type=jnp.float32)              # tap k=1: x[l]
        left = pad_ref[:, pl.ds(0, L2), 0:c].reshape(M2, c)
        acc += jnp.dot(left, w_ref[0:c, :],
                       preferred_element_type=jnp.float32)             # tap k=0: x[l-1]
        right = pad_ref[:, pl.ds(2, L2), 0:c].reshape(M2, c)
        acc += jnp.dot(right, w_ref[2 * c:3 * c, :],
                       preferred_element_type=jnp.float32)             # tap k=2: x[l+1]
        return acc + b_ref[...]

    # zero only the two halo rows of the shared bf16 padded scratch (done once;
    # both convs rewrite every interior row afterwards and read columns 0:c only)
    zrow = jnp.zeros((N, 1, pad_ref.shape[2]), pad_ref.dtype)
    pad_ref[:, 0:1, :] = zrow
    pad_ref[:, L2 + 1:L2 + 2, :] = zrow

    # ---- upsample branch: 1x1 conv (Cin -> Cin//2), bf16 x bf16 -> f32 acc ----
    y1 = jnp.dot(x1u_ref[...].reshape(M2, Cin), w_up_ref[...],
                 preferred_element_type=jnp.float32) + b_up_ref[...]

    # ---- channel concat [x2 | y1]: fused BN+ReLU per group, concat on lanes ----
    xa = _bn_relu(x2_ref[...].reshape(M2, Ch).astype(jnp.float32), g1a_ref, be1a_ref)
    xb = _bn_relu(y1, g1b_ref, be1b_ref)
    xcat = jnp.concatenate([xa, xb], axis=-1).astype(jnp.bfloat16)      # (M2, Cin)

    # ---- double conv: conv3 -> BN+ReLU -> conv3 ----
    h1 = conv3(xcat, Cin, w1_ref, bc1_ref)                              # (M2, Cout) f32
    h1r = _bn_relu(h1, g2_ref, be2_ref).astype(jnp.bfloat16)
    h2 = conv3(h1r, Cout, w2_ref, bc2_ref)                              # (M2, Cout) f32

    # ---- residual 1x1: single flattened matmul; skip add kept in f32 ----
    s = jnp.dot(h2.astype(jnp.bfloat16), wres_ref[...],
                preferred_element_type=jnp.float32) + bres_ref[...]
    out_ref[...] = (h2 + s).reshape(N, L2, Cout).astype(out_ref.dtype)


def init_params(key, channels_in, channels_out):
    """Deterministic synthetic parameters in PyTorch layouts (OIK / per-channel)."""
    ch = channels_in // 2
    ks = jax.random.split(key, 12)
    w = lambda k, shape, s=0.2: (s * jax.random.normal(k, shape)).astype(jnp.float32)
    return dict(
        w_up=w(ks[0], (ch, channels_in, 1)),
        b_up=w(ks[1], (ch,), 0.1),
        g1=(1.0 + w(ks[2], (channels_in,), 0.1)),
        be1=w(ks[3], (channels_in,), 0.1),
        w1=w(ks[4], (channels_out, channels_in, 3)),
        bc1=w(ks[5], (channels_out,), 0.1),
        g2=(1.0 + w(ks[6], (channels_out,), 0.1)),
        be2=w(ks[7], (channels_out,), 0.1),
        w2=w(ks[8], (channels_out, channels_out, 3)),
        bc2=w(ks[9], (channels_out,), 0.1),
        wres=w(ks[10], (channels_out, channels_out, 1)),
        bres=w(ks[11], (channels_out,), 0.1),
    )


def up_conv_forward(params, x1, x2):
    """x1: (N, Cin, L), x2: (N, Cin//2, 2L) -> (N, Cout, 2L)  (PyTorch NCL)."""
    N, Cin, L = x1.shape
    Ch = Cin // 2
    L2 = 2 * L
    Cout = params["w1"].shape[0]
    assert x2.shape == (N, Ch, L2)
    Cmax = max(Cin, Cout)

    # glue: nearest-neighbour upsample + NCL -> NLC, both activations fed as bf16
    # (halves HBM read bytes; BN statistics are still accumulated in f32 in-kernel).
    # TODO(synk): the interleaved scale-2 duplication has no robust single Mosaic
    # primitive, so it stays in XLA; moving the 1x1 conv before duplication (and
    # duplicating after BN inside the kernel) would halve this branch's cost.
    x1u_nlc = jnp.repeat(jnp.transpose(x1, (0, 2, 1)).astype(jnp.bfloat16), 2, axis=1)
    x2_nlc = jnp.transpose(x2, (0, 2, 1)).astype(jnp.bfloat16)

    # glue: re-layout parameters for the (N, L, C) kernel
    row = lambda v: v.reshape(1, -1).astype(jnp.float32)
    w_up = params["w_up"][:, :, 0].T.astype(jnp.bfloat16)                      # (Cin, Ch)
    w1 = jnp.transpose(params["w1"], (2, 1, 0)).reshape(3 * Cin, Cout).astype(jnp.bfloat16)
    w2 = jnp.transpose(params["w2"], (2, 1, 0)).reshape(3 * Cout, Cout).astype(jnp.bfloat16)
    wres_t = params["wres"][:, :, 0].T.astype(jnp.bfloat16)                    # (Cout, Cout)
    g1a, g1b = row(params["g1"][:Ch]), row(params["g1"][Ch:])
    be1a, be1b = row(params["be1"][:Ch]), row(params["be1"][Ch:])

    M2 = N * L2
    flops = 2 * M2 * (Cin * Ch + 3 * Cin * Cout + 3 * Cout * Cout + Cout * Cout)
    bytes_accessed = ((x1u_nlc.size + x2_nlc.size) * 2 + N * L2 * Cout * 4
                      + (w_up.size + w1.size + w2.size + wres_t.size) * 2)

    vmem = pl.BlockSpec(memory_space=pltpu.MemorySpace.VMEM)
    # NOTE: no vmem_limit_bytes override — the demo working set is a few hundred
    # KiB, well under every generation's default scoped-VMEM budget (and 64 MiB
    # would have claimed v7x's entire physical VMEM).
    out_nlc = pl.pallas_call(
        up_conv_kernel,
        out_shape=jax.ShapeDtypeStruct((N, L2, Cout), jnp.float32),
        in_specs=[vmem] * 16,
        out_specs=vmem,
        scratch_shapes=[pltpu.VMEM((N, L2 + 2, Cmax), jnp.bfloat16)],
        cost_estimate=pl.CostEstimate(flops=flops,
                                      transcendentals=Cin + Cout,
                                      bytes_accessed=bytes_accessed),
    )(x1u_nlc, x2_nlc,
      w_up, row(params["b_up"]),
      g1a, be1a, g1b, be1b,
      w1, row(params["bc1"]),
      row(params["g2"]), row(params["be2"]), w2, row(params["bc2"]),
      wres_t, row(params["bres"]))

    # kernel emits NLC (channels on the lane axis); cheap transpose to PyTorch NCL
    # is done here in XLA so the kernel's writeback stays channel-dense.
    return jnp.transpose(out_nlc, (0, 2, 1))


def ref_forward(params, x1, x2):
    """Pure-JAX f32 reference mirroring the PyTorch forward (training-mode BN)."""
    def conv1d(x, w, b, pad):
        y = lax.conv_general_dilated(x, w, (1,), [(pad, pad)],
                                     dimension_numbers=("NCH", "OIH", "NCH"))
        return y + b[None, :, None]

    def bn(x, g, be):
        mean = jnp.mean(x, axis=(0, 2), keepdims=True)
        var = jnp.mean((x - mean) ** 2, axis=(0, 2), keepdims=True)
        return (x - mean) / jnp.sqrt(var + EPS) * g[None, :, None] + be[None, :, None]

    x1u = jnp.repeat(x1, 2, axis=2)
    y1 = conv1d(x1u, params["w_up"], params["b_up"], 0)
    x = jnp.concatenate([x2, y1], axis=1)
    x = jax.nn.relu(bn(x, params["g1"], params["be1"]))
    x = conv1d(x, params["w1"], params["bc1"], 1)
    x = jax.nn.relu(bn(x, params["g2"], params["be2"]))
    x = conv1d(x, params["w2"], params["bc2"], 1)
    s = conv1d(x, params["wres"], params["bres"], 0)
    return x + s


if __name__ == "__main__":
    channels_in, channels_out = 16, 16
    N, L = 2, 16                      # x1 length; output length is 2L = 32

    key = jax.random.PRNGKey(0)
    kp, k1, k2 = jax.random.split(key, 3)
    params = init_params(kp, channels_in, channels_out)
    x1 = jax.random.normal(k1, (N, channels_in, L), jnp.float32)
    x2 = jax.random.normal(k2, (N, channels_in // 2, 2 * L), jnp.float32)

    out = jax.block_until_ready(up_conv_forward(params, x1, x2))
    ref = jax.block_until_ready(ref_forward(params, x1, x2))

    assert out.shape == (N, channels_out, 2 * L), out.shape
    err = float(jnp.max(jnp.abs(out - ref)))
    scale = float(jnp.max(jnp.abs(ref)))
    # kernel uses bf16 matmul operands / bf16 activation inputs (f32 accumulation
    # and f32 BN statistics), so allow a small relative slack vs. the pure-f32 ref.
    assert err <= 2.5e-2 * scale + 2.5e-2, f"max abs error {err} (ref scale {scale})"
    print("KERNEL_OK")
</pallas_src>

<mosaic_0001>
module attributes {stable_mosaic.version = 11 : i64} {
  func.func @up_conv_kernel(%arg0: memref<2x32x16xbf16, #tpu.memory_space<vmem>>, %arg1: memref<2x32x8xbf16, #tpu.memory_space<vmem>>, %arg2: memref<16x8xbf16, #tpu.memory_space<vmem>>, %arg3: memref<1x8xf32, #tpu.memory_space<vmem>>, %arg4: memref<1x8xf32, #tpu.memory_space<vmem>>, %arg5: memref<1x8xf32, #tpu.memory_space<vmem>>, %arg6: memref<1x8xf32, #tpu.memory_space<vmem>>, %arg7: memref<1x8xf32, #tpu.memory_space<vmem>>, %arg8: memref<48x16xbf16, #tpu.memory_space<vmem>>, %arg9: memref<1x16xf32, #tpu.memory_space<vmem>>, %arg10: memref<1x16xf32, #tpu.memory_space<vmem>>, %arg11: memref<1x16xf32, #tpu.memory_space<vmem>>, %arg12: memref<48x16xbf16, #tpu.memory_space<vmem>>, %arg13: memref<1x16xf32, #tpu.memory_space<vmem>>, %arg14: memref<16x16xbf16, #tpu.memory_space<vmem>>, %arg15: memref<1x16xf32, #tpu.memory_space<vmem>>, %arg16: memref<2x32x16xf32, #tpu.memory_space<vmem>>, %arg17: memref<2x34x16xbf16, #tpu.memory_space<vmem>>) attributes {dimension_semantics = [], scalar_prefetch = 0 : i64, scratch_operands = 1 : i64, tpu.core_type = #tpu.core_type<tc>} {
    %cst = arith.constant 0.000000e+00 : bf16
    %0 = vector.broadcast %cst : bf16 to vector<2x1x16xbf16>
    %c0 = arith.constant 0 : index
    %c0_0 = arith.constant 0 : index
    %c0_1 = arith.constant 0 : index
    %1 = vector.load %arg17[%c0, %c0_0, %c0_1] : memref<2x34x16xbf16, #tpu.memory_space<vmem>>, vector<2x1x16xbf16>
    tpu.vector_store %arg17[%c0, %c0_0, %c0_1], %0 {strides = array<i32>} : memref<2x34x16xbf16, #tpu.memory_space<vmem>>, vector<2x1x16xbf16>,
    %c0_2 = arith.constant 0 : index
    %c33 = arith.constant 33 : index
    %c0_3 = arith.constant 0 : index
    %2 = vector.load %arg17[%c0_2, %c33, %c0_3] : memref<2x34x16xbf16, #tpu.memory_space<vmem>>, vector<2x1x16xbf16>
    tpu.vector_store %arg17[%c0_2, %c33, %c0_3], %0 {strides = array<i32>} : memref<2x34x16xbf16, #tpu.memory_space<vmem>>, vector<2x1x16xbf16>,
    %c0_4 = arith.constant 0 : index
    %c0_5 = arith.constant 0 : index
    %c0_6 = arith.constant 0 : index
    %3 = vector.load %arg0[%c0_4, %c0_5, %c0_6] : memref<2x32x16xbf16, #tpu.memory_space<vmem>>, vector<2x32x16xbf16>
    %4 = vector.shape_cast %3 : vector<2x32x16xbf16> to vector<64x16xbf16>
    %c0_7 = arith.constant 0 : index
    %c0_8 = arith.constant 0 : index
    %5 = vector.load %arg2[%c0_7, %c0_8] : memref<16x8xbf16, #tpu.memory_space<vmem>>, vector<16x8xbf16>
    %cst_9 = arith.constant dense<0.000000e+00> : vector<64x8xf32>
    %6 = tpu.matmul %4, %5, %cst_9 {dimension_numbers = #tpu.dot_dimension_numbers<[1], [0], [0], [1], [0, 0, 1, 1], [], []>} : vector<64x16xbf16>, vector<16x8xbf16>, vector<64x8xf32> -> vector<64x8xf32>
    %c0_10 = arith.constant 0 : index
    %c0_11 = arith.constant 0 : index
    %7 = vector.load %arg3[%c0_10, %c0_11] : memref<1x8xf32, #tpu.memory_space<vmem>>, vector<1x8xf32>
    %8 = vector.broadcast %7 : vector<1x8xf32> to vector<64x8xf32>
    %9 = arith.addf %6, %8 : vector<64x8xf32>
    %c0_12 = arith.constant 0 : index
    %c0_13 = arith.constant 0 : index
    %c0_14 = arith.constant 0 : index
    %10 = vector.load %arg1[%c0_12, %c0_13, %c0_14] : memref<2x32x8xbf16, #tpu.memory_space<vmem>>, vector<2x32x8xbf16>
    %11 = vector.shape_cast %10 : vector<2x32x8xbf16> to vector<64x8xbf16>
    %12 = arith.extf %11 : vector<64x8xbf16> to vector<64x8xf32>
    %cst_15 = arith.constant dense<0.000000e+00> : vector<8xf32>
    %13 = vector.multi_reduction <add>, %12, %cst_15 [0] : vector<64x8xf32> to vector<8xf32>
    %14 = vector.shape_cast %13 : vector<8xf32> to vector<1x8xf32>
    %cst_16 = arith.constant 1.562500e-02 : f32
    %15 = vector.broadcast %cst_16 : f32 to vector<1x8xf32>
    %16 = arith.mulf %14, %15 : vector<1x8xf32>
    %17 = vector.broadcast %16 : vector<1x8xf32> to vector<64x8xf32>
    %18 = arith.subf %12, %17 : vector<64x8xf32>
    %19 = arith.mulf %18, %18 : vector<64x8xf32>
    %cst_17 = arith.constant dense<0.000000e+00> : vector<8xf32>
    %20 = vector.multi_reduction <add>, %19, %cst_17 [0] : vector<64x8xf32> to vector<8xf32>
    %21 = vector.shape_cast %20 : vector<8xf32> to vector<1x8xf32>
    %cst_18 = arith.constant 1.562500e-02 : f32
    %22 = vector.broadcast %cst_18 : f32 to vector<1x8xf32>
    %23 = arith.mulf %21, %22 : vector<1x8xf32>
    %c0_19 = arith.constant 0 : index
    %c0_20 = arith.constant 0 : index
    %24 = vector.load %arg4[%c0_19, %c0_20] : memref<1x8xf32, #tpu.memory_space<vmem>>, vector<1x8xf32>
    %cst_21 = arith.constant 9.99999974E-6 : f32
    %25 = vector.broadcast %cst_21 : f32 to vector<1x8xf32>
    %26 = arith.addf %23, %25 : vector<1x8xf32>
    %27 = math.rsqrt %26 : vector<1x8xf32>
    %28 = arith.mulf %24, %27 : vector<1x8xf32>
    %29 = vector.broadcast %28 : vector<1x8xf32> to vector<64x8xf32>
    %30 = arith.mulf %18, %29 : vector<64x8xf32>
    %c0_22 = arith.constant 0 : index
    %c0_23 = arith.constant 0 : index
    %31 = vector.load %arg5[%c0_22, %c0_23] : memref<1x8xf32, #tpu.memory_space<vmem>>, vector<1x8xf32>
    %32 = vector.broadcast %31 : vector<1x8xf32> to vector<64x8xf32>
    %33 = arith.addf %30, %32 : vector<64x8xf32>
    %cst_24 = arith.constant 0.000000e+00 : f32
    %34 = vector.broadcast %cst_24 : f32 to vector<64x8xf32>
    %35 = arith.maximumf %33, %34 : vector<64x8xf32>
    %cst_25 = arith.constant dense<0.000000e+00> : vector<8xf32>
    %36 = vector.multi_reduction <add>, %9, %cst_25 [0] : vector<64x8xf32> to vector<8xf32>
    %37 = vector.shape_cast %36 : vector<8xf32> to vector<1x8xf32>
    %cst_26 = arith.constant 1.562500e-02 : f32
    %38 = vector.broadcast %cst_26 : f32 to vector<1x8xf32>
    %39 = arith.mulf %37, %38 : vector<1x8xf32>
    %40 = vector.broadcast %39 : vector<1x8xf32> to vector<64x8xf32>
    %41 = arith.subf %9, %40 : vector<64x8xf32>
    %42 = arith.mulf %41, %41 : vector<64x8xf32>
    %cst_27 = arith.constant dense<0.000000e+00> : vector<8xf32>
    %43 = vector.multi_reduction <add>, %42, %cst_27 [0] : vector<64x8xf32> to vector<8xf32>
    %44 = vector.shape_cast %43 : vector<8xf32> to vector<1x8xf32>
    %cst_28 = arith.constant 1.562500e-02 : f32
    %45 = vector.broadcast %cst_28 : f32 to vector<1x8xf32>
    %46 = arith.mulf %44, %45 : vector<1x8xf32>
    %c0_29 = arith.constant 0 : index
    %c0_30 = arith.constant 0 : index
    %47 = vector.load %arg6[%c0_29, %c0_30] : memref<1x8xf32, #tpu.memory_space<vmem>>, vector<1x8xf32>
    %cst_31 = arith.constant 9.99999974E-6 : f32
    %48 = vector.broadcast %cst_31 : f32 to vector<1x8xf32>
    %49 = arith.addf %46, %48 : vector<1x8xf32>
    %50 = math.rsqrt %49 : vector<1x8xf32>
    %51 = arith.mulf %47, %50 : vector<1x8xf32>
    %52 = vector.broadcast %51 : vector<1x8xf32> to vector<64x8xf32>
    %53 = arith.mulf %41, %52 : vector<64x8xf32>
    %c0_32 = arith.constant 0 : index
    %c0_33 = arith.constant 0 : index
    %54 = vector.load %arg7[%c0_32, %c0_33] : memref<1x8xf32, #tpu.memory_space<vmem>>, vector<1x8xf32>
    %55 = vector.broadcast %54 : vector<1x8xf32> to vector<64x8xf32>
    %56 = arith.addf %53, %55 : vector<64x8xf32>
    %cst_34 = arith.constant 0.000000e+00 : f32
    %57 = vector.broadcast %cst_34 : f32 to vector<64x8xf32>
    %58 = arith.maximumf %56, %57 : vector<64x8xf32>
    %59 = tpu.concatenate %35, %58 in 1 : vector<64x8xf32>, vector<64x8xf32> -> vector<64x16xf32>
    %60 = arith.truncf %59 : vector<64x16xf32> to vector<64x16xbf16>
    %61 = vector.shape_cast %60 : vector<64x16xbf16> to vector<2x32x16xbf16>
    %c0_35 = arith.constant 0 : index
    %c1 = arith.constant 1 : index
    %c0_36 = arith.constant 0 : index
    %62 = vector.load %arg17[%c0_35, %c1, %c0_36] : memref<2x34x16xbf16, #tpu.memory_space<vmem>>, vector<2x32x16xbf16>
    tpu.vector_store %arg17[%c0_35, %c1, %c0_36], %61 {strides = array<i32>} : memref<2x34x16xbf16, #tpu.memory_space<vmem>>, vector<2x32x16xbf16>,
    %c16 = arith.constant 16 : index
    %c0_37 = arith.constant 0 : index
    %63 = vector.load %arg8[%c16, %c0_37] : memref<48x16xbf16, #tpu.memory_space<vmem>>, vector<16x16xbf16>
    %cst_38 = arith.constant dense<0.000000e+00> : vector<64x16xf32>
    %64 = tpu.matmul %60, %63, %cst_38 {dimension_numbers = #tpu.dot_dimension_numbers<[1], [0], [0], [1], [0, 0, 1, 1], [], []>} : vector<64x16xbf16>, vector<16x16xbf16>, vector<64x16xf32> -> vector<64x16xf32>
    %c0_39 = arith.constant 0 : index
    %c0_40 = arith.constant 0 : index
    %c0_41 = arith.constant 0 : index
    %65 = vector.load %arg17[%c0_39, %c0_40, %c0_41] : memref<2x34x16xbf16, #tpu.memory_space<vmem>>, vector<2x32x16xbf16>
    %66 = vector.shape_cast %65 : vector<2x32x16xbf16> to vector<64x16xbf16>
    %c0_42 = arith.constant 0 : index
    %c0_43 = arith.constant 0 : index
    %67 = vector.load %arg8[%c0_42, %c0_43] : memref<48x16xbf16, #tpu.memory_space<vmem>>, vector<16x16xbf16>
    %cst_44 = arith.constant dense<0.000000e+00> : vector<64x16xf32>
    %68 = tpu.matmul %66, %67, %cst_44 {dimension_numbers = #tpu.dot_dimension_numbers<[1], [0], [0], [1], [0, 0, 1, 1], [], []>} : vector<64x16xbf16>, vector<16x16xbf16>, vector<64x16xf32> -> vector<64x16xf32>
    %69 = arith.addf %64, %68 : vector<64x16xf32>
    %c0_45 = arith.constant 0 : index
    %c2 = arith.constant 2 : index
    %c0_46 = arith.constant 0 : index
    %70 = vector.load %arg17[%c0_45, %c2, %c0_46] : memref<2x34x16xbf16, #tpu.memory_space<vmem>>, vector<2x32x16xbf16>
    %71 = vector.shape_cast %70 : vector<2x32x16xbf16> to vector<64x16xbf16>
    %c32 = arith.constant 32 : index
    %c0_47 = arith.constant 0 : index
    %72 = vector.load %arg8[%c32, %c0_47] : memref<48x16xbf16, #tpu.memory_space<vmem>>, vector<16x16xbf16>
    %cst_48 = arith.constant dense<0.000000e+00> : vector<64x16xf32>
    %73 = tpu.matmul %71, %72, %cst_48 {dimension_numbers = #tpu.dot_dimension_numbers<[1], [0], [0], [1], [0, 0, 1, 1], [], []>} : vector<64x16xbf16>, vector<16x16xbf16>, vector<64x16xf32> -> vector<64x16xf32>
    %74 = arith.addf %69, %73 : vector<64x16xf32>
    %c0_49 = arith.constant 0 : index
    %c0_50 = arith.constant 0 : index
    %75 = vector.load %arg9[%c0_49, %c0_50] : memref<1x16xf32, #tpu.memory_space<vmem>>, vector<1x16xf32>
    %76 = vector.broadcast %75 : vector<1x16xf32> to vector<64x16xf32>
    %77 = arith.addf %74, %76 : vector<64x16xf32>
    %cst_51 = arith.constant dense<0.000000e+00> : vector<16xf32>
    %78 = vector.multi_reduction <add>, %77, %cst_51 [0] : vector<64x16xf32> to vector<16xf32>
    %79 = vector.shape_cast %78 : vector<16xf32> to vector<1x16xf32>
    %cst_52 = arith.constant 1.562500e-02 : f32
    %80 = vector.broadcast %cst_52 : f32 to vector<1x16xf32>
    %81 = arith.mulf %79, %80 : vector<1x16xf32>
    %82 = vector.broadcast %81 : vector<1x16xf32> to vector<64x16xf32>
    %83 = arith.subf %77, %82 : vector<64x16xf32>
    %84 = arith.mulf %83, %83 : vector<64x16xf32>
    %cst_53 = arith.constant dense<0.000000e+00> : vector<16xf32>
    %85 = vector.multi_reduction <add>, %84, %cst_53 [0] : vector<64x16xf32> to vector<16xf32>
    %86 = vector.shape_cast %85 : vector<16xf32> to vector<1x16xf32>
    %cst_54 = arith.constant 1.562500e-02 : f32
    %87 = vector.broadcast %cst_54 : f32 to vector<1x16xf32>
    %88 = arith.mulf %86, %87 : vector<1x16xf32>
    %c0_55 = arith.constant 0 : index
    %c0_56 = arith.constant 0 : index
    %89 = vector.load %arg10[%c0_55, %c0_56] : memref<1x16xf32, #tpu.memory_space<vmem>>, vector<1x16xf32>
    %cst_57 = arith.constant 9.99999974E-6 : f32
    %90 = vector.broadcast %cst_57 : f32 to vector<1x16xf32>
    %91 = arith.addf %88, %90 : vector<1x16xf32>
    %92 = math.rsqrt %91 : vector<1x16xf32>
    %93 = arith.mulf %89, %92 : vector<1x16xf32>
    %94 = vector.broadcast %93 : vector<1x16xf32> to vector<64x16xf32>
    %95 = arith.mulf %83, %94 : vector<64x16xf32>
    %c0_58 = arith.constant 0 : index
    %c0_59 = arith.constant 0 : index
    %96 = vector.load %arg11[%c0_58, %c0_59] : memref<1x16xf32, #tpu.memory_space<vmem>>, vector<1x16xf32>
    %97 = vector.broadcast %96 : vector<1x16xf32> to vector<64x16xf32>
    %98 = arith.addf %95, %97 : vector<64x16xf32>
    %cst_60 = arith.constant 0.000000e+00 : f32
    %99 = vector.broadcast %cst_60 : f32 to vector<64x16xf32>
    %100 = arith.maximumf %98, %99 : vector<64x16xf32>
    %101 = arith.truncf %100 : vector<64x16xf32> to vector<64x16xbf16>
    %102 = vector.shape_cast %101 : vector<64x16xbf16> to vector<2x32x16xbf16>
    %c0_61 = arith.constant 0 : index
    %c1_62 = arith.constant 1 : index
    %c0_63 = arith.constant 0 : index
    %103 = vector.load %arg17[%c0_61, %c1_62, %c0_63] : memref<2x34x16xbf16, #tpu.memory_space<vmem>>, vector<2x32x16xbf16>
    tpu.vector_store %arg17[%c0_61, %c1_62, %c0_63], %102 {strides = array<i32>} : memref<2x34x16xbf16, #tpu.memory_space<vmem>>, vector<2x32x16xbf16>,
    %c16_64 = arith.constant 16 : index
    %c0_65 = arith.constant 0 : index
    %104 = vector.load %arg12[%c16_64, %c0_65] : memref<48x16xbf16, #tpu.memory_space<vmem>>, vector<16x16xbf16>
    %cst_66 = arith.constant dense<0.000000e+00> : vector<64x16xf32>
    %105 = tpu.matmul %101, %104, %cst_66 {dimension_numbers = #tpu.dot_dimension_numbers<[1], [0], [0], [1], [0, 0, 1, 1], [], []>} : vector<64x16xbf16>, vector<16x16xbf16>, vector<64x16xf32> -> vector<64x16xf32>
    %c0_67 = arith.constant 0 : index
    %c0_68 = arith.constant 0 : index
    %c0_69 = arith.constant 0 : index
    %106 = vector.load %arg17[%c0_67, %c0_68, %c0_69] : memref<2x34x16xbf16, #tpu.memory_space<vmem>>, vector<2x32x16xbf16>
    %107 = vector.shape_cast %106 : vector<2x32x16xbf16> to vector<64x16xbf16>
    %c0_70 = arith.constant 0 : index
    %c0_71 = arith.constant 0 : index
    %108 = vector.load %arg12[%c0_70, %c0_71] : memref<48x16xbf16, #tpu.memory_space<vmem>>, vector<16x16xbf16>
    %cst_72 = arith.constant dense<0.000000e+00> : vector<64x16xf32>
    %109 = tpu.matmul %107, %108, %cst_72 {dimension_numbers = #tpu.dot_dimension_numbers<[1], [0], [0], [1], [0, 0, 1, 1], [], []>} : vector<64x16xbf16>, vector<16x16xbf16>, vector<64x16xf32> -> vector<64x16xf32>
    %110 = arith.addf %105, %109 : vector<64x16xf32>
    %c0_73 = arith.constant 0 : index
    %c2_74 = arith.constant 2 : index
    %c0_75 = arith.constant 0 : index
    %111 = vector.load %arg17[%c0_73, %c2_74, %c0_75] : memref<2x34x16xbf16, #tpu.memory_space<vmem>>, vector<2x32x16xbf16>
    %112 = vector.shape_cast %111 : vector<2x32x16xbf16> to vector<64x16xbf16>
    %c32_76 = arith.constant 32 : index
    %c0_77 = arith.constant 0 : index
    %113 = vector.load %arg12[%c32_76, %c0_77] : memref<48x16xbf16, #tpu.memory_space<vmem>>, vector<16x16xbf16>
    %cst_78 = arith.constant dense<0.000000e+00> : vector<64x16xf32>
    %114 = tpu.matmul %112, %113, %cst_78 {dimension_numbers = #tpu.dot_dimension_numbers<[1], [0], [0], [1], [0, 0, 1, 1], [], []>} : vector<64x16xbf16>, vector<16x16xbf16>, vector<64x16xf32> -> vector<64x16xf32>
    %115 = arith.addf %110, %114 : vector<64x16xf32>
    %c0_79 = arith.constant 0 : index
    %c0_80 = arith.constant 0 : index
    %116 = vector.load %arg13[%c0_79, %c0_80] : memref<1x16xf32, #tpu.memory_space<vmem>>, vector<1x16xf32>
    %117 = vector.broadcast %116 : vector<1x16xf32> to vector<64x16xf32>
    %118 = arith.addf %115, %117 : vector<64x16xf32>
    %119 = arith.truncf %118 : vector<64x16xf32> to vector<64x16xbf16>
    %c0_81 = arith.constant 0 : index
    %c0_82 = arith.constant 0 : index
    %120 = vector.load %arg14[%c0_81, %c0_82] : memref<16x16xbf16, #tpu.memory_space<vmem>>, vector<16x16xbf16>
    %cst_83 = arith.constant dense<0.000000e+00> : vector<64x16xf32>
    %121 = tpu.matmul %119, %120, %cst_83 {dimension_numbers = #tpu.dot_dimension_numbers<[1], [0], [0], [1], [0, 0, 1, 1], [], []>} : vector<64x16xbf16>, vector<16x16xbf16>, vector<64x16xf32> -> vector<64x16xf32>
    %c0_84 = arith.constant 0 : index
    %c0_85 = arith.constant 0 : index
    %122 = vector.load %arg15[%c0_84, %c0_85] : memref<1x16xf32, #tpu.memory_space<vmem>>, vector<1x16xf32>
    %123 = vector.broadcast %122 : vector<1x16xf32> to vector<64x16xf32>
    %124 = arith.addf %121, %123 : vector<64x16xf32>
    %125 = arith.addf %118, %124 : vector<64x16xf32>
    %126 = vector.shape_cast %125 : vector<64x16xf32> to vector<2x32x16xf32>
    %c0_86 = arith.constant 0 : index
    %c0_87 = arith.constant 0 : index
    %c0_88 = arith.constant 0 : index
    %127 = vector.load %arg16[%c0_86, %c0_87, %c0_88] : memref<2x32x16xf32, #tpu.memory_space<vmem>>, vector<2x32x16xf32>
    tpu.vector_store %arg16[%c0_86, %c0_87, %c0_88], %126 {strides = array<i32>} : memref<2x32x16xf32, #tpu.memory_space<vmem>>, vector<2x32x16xf32>,
    return
  }
}

</mosaic_0001>

<llo_original>
// kernel: tpu_custom_call.1
$region0: #{tpu_custom_call.1}
  #allocation0 [shape = 'u32[]', space=smem, size = 0x4, offset = 0x4, fixed_abs, tag = 'smem constant byte address 0x4 - core index']
  #allocation1 [shape = 'u32[144,128]{1,0:T(1,128)}', space=vmem, size = 0x12000, scoped, tag = 'internal scratch']
  #allocation2 [shape = 'bf16[2,34,16]{2,1,0:T(8,128)(2,1)}', space=vmem, size = 0x5000, scoped, tag = 'scratch operand']
  %s0 = inlined_call_operand.vmem [shape: bf16[2,32,16], index: 0, kind: input, shape index: {}]
  %s1 = inlined_call_operand.vmem [shape: bf16[2,32,8], index: 1, kind: input, shape index: {}]
  %s2 = inlined_call_operand.vmem [shape: bf16[16,8], index: 2, kind: input, shape index: {}]
  %s3 = inlined_call_operand.vmem [shape: f32[1,8], index: 3, kind: input, shape index: {}]
  %s4 = inlined_call_operand.vmem [shape: f32[1,8], index: 4, kind: input, shape index: {}]
  %s5 = inlined_call_operand.vmem [shape: f32[1,8], index: 5, kind: input, shape index: {}]
  %s6 = inlined_call_operand.vmem [shape: f32[1,8], index: 6, kind: input, shape index: {}]
  %s7 = inlined_call_operand.vmem [shape: f32[1,8], index: 7, kind: input, shape index: {}]
  %s8 = inlined_call_operand.vmem [shape: bf16[48,16], index: 8, kind: input, shape index: {}]
  %s9 = inlined_call_operand.vmem [shape: f32[1,16], index: 9, kind: input, shape index: {}]
  %s10 = inlined_call_operand.vmem [shape: f32[1,16], index: 10, kind: input, shape index: {}]
  %s11 = inlined_call_operand.vmem [shape: f32[1,16], index: 11, kind: input, shape index: {}]
  %s12 = inlined_call_operand.vmem [shape: bf16[48,16], index: 12, kind: input, shape index: {}]
  %s13 = inlined_call_operand.vmem [shape: f32[1,16], index: 13, kind: input, shape index: {}]
  %s14 = inlined_call_operand.vmem [shape: bf16[16,16], index: 14, kind: input, shape index: {}]
  %s15 = inlined_call_operand.vmem [shape: f32[1,16], index: 15, kind: input, shape index: {}]
  %s16 = inlined_call_operand.vmem [shape: f32[2,32,16], index: 16, kind: output, shape index: {}]
  %s17 = sld [smem:[#allocation0]]
  $region74: #{tpu_custom_call.1} parent=0
    _
  %s19 = ssub.s32 1, %s17
  %s20 = scalar_select 0, %s19, %s17
  // Predicated region
  $region2: #{tpu_custom_call.1} parent=0 // pred_check
    _
  $region3: #{tpu_custom_call.1} parent=0 // pred_check_branch
    %22 = sbr.rel (0) target = $region5
  $region4: #{tpu_custom_call.1} parent=0 // pred_region
    _
  $region5: #{tpu_custom_call.1} parent=0 // pred_fallthru
    _
  // Predicated region
  $region6: #{tpu_custom_call.1} parent=0 // pred_check
    _
  $region7: #{tpu_custom_call.1} parent=0 // pred_check_branch
    %24 = sbr.rel (0) target = $region9
  $region8: #{tpu_custom_call.1} parent=0 // pred_region
    _
  $region9: #{tpu_custom_call.1} parent=0 // pred_fallthru
    _
  // Predicated region
  $region10: #{tpu_custom_call.1} parent=0 // pred_check
    _
  $region11: #{tpu_custom_call.1} parent=0 // pred_check_branch
    %26 = sbr.rel (0) target = $region13
  $region12: #{tpu_custom_call.1} parent=0 // pred_region
    _
  $region13: #{tpu_custom_call.1} parent=0 // pred_fallthru
    _
  // Predicated region
  $region14: #{tpu_custom_call.1} parent=0 // pred_check
    _
  $region15: #{tpu_custom_call.1} parent=0 // pred_check_branch
    %28 = sbr.rel (0) target = $region17
  $region16: #{tpu_custom_call.1} parent=0 // pred_region
    _
  $region17: #{tpu_custom_call.1} parent=0 // pred_fallthru
    _
  // Predicated region
  $region18: #{tpu_custom_call.1} parent=0 // pred_check
    _
  $region19: #{tpu_custom_call.1} parent=0 // pred_check_branch
    %30 = sbr.rel (0) target = $region21
  $region20: #{tpu_custom_call.1} parent=0 // pred_region
    _
  $region21: #{tpu_custom_call.1} parent=0 // pred_fallthru
    _
  // Predicated region
  $region22: #{tpu_custom_call.1} parent=0 // pred_check
    _
  $region23: #{tpu_custom_call.1} parent=0 // pred_check_branch
    %32 = sbr.rel (0) target = $region25
  $region24: #{tpu_custom_call.1} parent=0 // pred_region
    _
  $region25: #{tpu_custom_call.1} parent=0 // pred_fallthru
    _
  // Predicated region
  $region26: #{tpu_custom_call.1} parent=0 // pred_check
    _
  $region27: #{tpu_custom_call.1} parent=0 // pred_check_branch
    %34 = sbr.rel (0) target = $region29
  $region28: #{tpu_custom_call.1} parent=0 // pred_region
    _
  $region29: #{tpu_custom_call.1} parent=0 // pred_fallthru
    _
  // Predicated region
  $region30: #{tpu_custom_call.1} parent=0 // pred_check
    _
  $region31: #{tpu_custom_call.1} parent=0 // pred_check_branch
    %36 = sbr.rel (0) target = $region33
  $region32: #{tpu_custom_call.1} parent=0 // pred_region
    _
  $region33: #{tpu_custom_call.1} parent=0 // pred_fallthru
    _
  // Predicated region
  $region34: #{tpu_custom_call.1} parent=0 // pred_check
    _
  $region35: #{tpu_custom_call.1} parent=0 // pred_check_branch
    %38 = sbr.rel (0) target = $region37
  $region36: #{tpu_custom_call.1} parent=0 // pred_region
    _
  $region37: #{tpu_custom_call.1} parent=0 // pred_fallthru
    _
  // Predicated region
  $region38: #{tpu_custom_call.1} parent=0 // pred_check
    _
  $region39: #{tpu_custom_call.1} parent=0 // pred_check_branch
    %40 = sbr.rel (0) target = $region41
  $region40: #{tpu_custom_call.1} parent=0 // pred_region
    _
  $region41: #{tpu_custom_call.1} parent=0 // pred_fallthru
    _
  // Predicated region
  $region42: #{tpu_custom_call.1} parent=0 // pred_check
    _
  $region43: #{tpu_custom_call.1} parent=0 // pred_check_branch
    %42 = sbr.rel (0) target = $region45
  $region44: #{tpu_custom_call.1} parent=0 // pred_region
    _
  $region45: #{tpu_custom_call.1} parent=0 // pred_fallthru
    _
  // Predicated region
  $region46: #{tpu_custom_call.1} parent=0 // pred_check
    _
  $region47: #{tpu_custom_call.1} parent=0 // pred_check_branch
    %44 = sbr.rel (0) target = $region49
  $region48: #{tpu_custom_call.1} parent=0 // pred_region
    _
  $region49: #{tpu_custom_call.1} parent=0 // pred_fallthru
    _
  // Predicated region
  $region50: #{tpu_custom_call.1} parent=0 // pred_check
    _
  $region51: #{tpu_custom_call.1} parent=0 // pred_check_branch
    %46 = sbr.rel (0) target = $region53
  $region52: #{tpu_custom_call.1} parent=0 // pred_region
    _
  $region53: #{tpu_custom_call.1} parent=0 // pred_fallthru
    _
  // Predicated region
  $region54: #{tpu_custom_call.1} parent=0 // pred_check
    _
  $region55: #{tpu_custom_call.1} parent=0 // pred_check_branch
    %48 = sbr.rel (0) target = $region57
  $region56: #{tpu_custom_call.1} parent=0 // pred_region
    _
  $region57: #{tpu_custom_call.1} parent=0 // pred_fallthru
    _
  // Predicated region
  $region58: #{tpu_custom_call.1} parent=0 // pred_check
    _
  $region59: #{tpu_custom_call.1} parent=0 // pred_check_branch
    %50 = sbr.rel (0) target = $region61
  $region60: #{tpu_custom_call.1} parent=0 // pred_region
    _
  $region61: #{tpu_custom_call.1} parent=0 // pred_fallthru
    _
  // Predicated region
  $region62: #{tpu_custom_call.1} parent=0 // pred_check
    _
  $region63: #{tpu_custom_call.1} parent=0 // pred_check_branch
    %52 = sbr.rel (0) target = $region65
  $region64: #{tpu_custom_call.1} parent=0 // pred_region
    _
  $region65: #{tpu_custom_call.1} parent=0 // pred_fallthru
    _
  %vm54 = vcmask 122880
  %vm55 = vsmask.f32 256
  %vm56 = vmand %vm54, %vm55
  %v57 = vld [vmem:[#allocation2] sm:$0x1]
  %v58 = vsel %vm56, 0, %v57
  %59 = vst [vmem:[#allocation2] sm:$0x1] %v58
  %v60 = vld [vmem:[#allocation2 + $0x14] sm:$0x1]
  %v61 = vsel %vm56, 0, %v60
  %62 = vst [vmem:[#allocation2 + $0x14] sm:$0x1] %v61
  %vm63 = vsmask.f32 7938
  %vm64 = vmand %vm54, %vm63
  %v65 = vld [vmem:[#allocation2 + $0x10] sm:$0x1]
  %v66 = vsel %vm64, 0, %v65
  %67 = vst [vmem:[#allocation2 + $0x10] sm:$0x1] %v66
  %v68 = vld [vmem:[#allocation2 + $0x24] sm:$0x1]
  %v69 = vsel %vm64, 0, %v68
  %70 = vst [vmem:[#allocation2 + $0x24] sm:$0x1] %v69
  %v71 = vld [vmem:[%s0] sm:$0xf]
  %v72 = vld [vmem:[%s0 + $0x4] sm:$0xf]
  %v73 = vld [vmem:[%s0 + $0x8] sm:$0xf]
  %v74 = vld [vmem:[%s0 + $0xc] sm:$0xf]
  %v75 = vld [vmem:[%s0 + $0x10] sm:$0xf]
  %v76 = vld [vmem:[%s0 + $0x14] sm:$0xf]
  %v77 = vld [vmem:[%s0 + $0x18] sm:$0xf]
  %v78 = vld [vmem:[%s0 + $0x1c] sm:$0xf]
  %v79 = vld [vmem:[%s2] sm:$0xf]
  %v80 = vld [vmem:[%s2 + $0x4] sm:$0xf]
  %v81 = vld [vmem:[%s3] sm:$0x1]
  %v83 = vlaneseq
  %v84 = vshrl.u32 %v83, 7
  %v85 = vsub.s32 0, %v84
  %v86 = vrot.slane %v81, %v85
  %v96 = vunpack.c.l.b16 %v71
  %v97 = vunpack.c.l.b16 %v72
  %v98 = vunpack.c.l.b16 %v73
  %v99 = vunpack.c.l.b16 %v74
  %v100 = vunpack.c.l.b16 %v75
  %v101 = vunpack.c.l.b16 %v76
  %v102 = vunpack.c.l.b16 %v77
  %v103 = vunpack.c.l.b16 %v78
  %v104 = vpack.c.b16 %v97, %v96
  %v105 = vpack.c.b16 %v99, %v98
  %v106 = vpack.c.b16 %v101, %v100
  %v107 = vpack.c.b16 %v103, %v102
  %v110 = vunpack.c.l.b16 %v79
  %v111 = vunpack.c.l.b16 %v80
  %v112 = vpack.c.b16 %v111, %v110
  %vm114 = vcmask 130048
  %v116 = vsel %vm114, %v104, 0
  %v119 = vsel %vm114, %v105, 0
  %v122 = vsel %vm114, %v106, 0
  %v125 = vsel %vm114, %v107, 0
  %127 = vmatprep.subr.bf16.mxu0 0
  %128 = vmatpush1.bf16.msra.mxu0 %v112
  %129 = vmatprep.subr.bf16.mxu0 0
  %130 = vmatpush1.bf16.msra.mxu0 0
  %131 = vmatprep.subr.bf16.mxu0 0
  %132 = vmatpush1.bf16.msra.mxu0 0
  %133 = vmatprep.subr.bf16.mxu0 0
  %134 = vmatpush1.bf16.msra.mxu0 0
  %135 = vmatprep.subr.bf16.mxu0 0
  %136 = vmatpush1.bf16.msra.mxu0 0
  %137 = vmatprep.subr.bf16.mxu0 0
  %138 = vmatpush1.bf16.msra.mxu0 0
  %139 = vmatprep.subr.bf16.mxu0 0
  %140 = vmatpush1.bf16.msra.mxu0 0
  %141 = vmatprep.subr.bf16.mxu0 0
  %142 = vmatpush1.bf16.msra.mxu0 0
  %143 = vmatprep.subr.bf16.mxu0 0
  %144 = vmatpush1.bf16.msra.mxu0 0
  %145 = vmatprep.subr.bf16.mxu0 0
  %146 = vmatpush1.bf16.msra.mxu0 0
  %147 = vmatprep.subr.bf16.mxu0 0
  %148 = vmatpush1.bf16.msra.mxu0 0
  %149 = vmatprep.subr.bf16.mxu0 0
  %150 = vmatpush1.bf16.msra.mxu0 0
  %151 = vmatprep.subr.bf16.mxu0 0
  %152 = vmatpush1.bf16.msra.mxu0 0
  %153 = vmatprep.subr.bf16.mxu0 0
  %154 = vmatpush1.bf16.msra.mxu0 0
  %155 = vmatprep.subr.bf16.mxu0 0
  %156 = vmatpush1.bf16.msra.mxu0 0
  %157 = vmatprep.subr.bf16.mxu0 0
  %158 = vmatpush1.bf16.msra.mxu0 0
  %159 = vmatprep.mubr.bf16.mxu0 0
  %160 = vmatmul.mubr.bf16.gmra.mrb[0].mxu0 %v116
  %v161 = vpop.f32.mrb[0].mxu0
  %v162 = vadd.f32 %v86, %v161
  %v163 = vpop.f32.mrb[0].mxu0
  %v164 = vpop.f32.mrb[0].mxu0
  %v165 = vadd.f32 %v86, %v164
  %v166 = vpop.f32.mrb[0].mxu0
  %167 = vmatprep.mubr.bf16.mxu0 0
  %168 = vmatmul.mubr.bf16.gmra.mrb[0].mxu0 %v119
  %v169 = vpop.f32.mrb[0].mxu0
  %v170 = vadd.f32 %v86, %v169
  %v171 = vpop.f32.mrb[0].mxu0
  %v172 = vpop.f32.mrb[0].mxu0
  %v173 = vadd.f32 %v86, %v172
  %v174 = vpop.f32.mrb[0].mxu0
  %175 = vmatprep.mubr.bf16.mxu0 0
  %176 = vmatmul.mubr.bf16.gmra.mrb[0].mxu0 %v122
  %v177 = vpop.f32.mrb[0].mxu0
  %v178 = vadd.f32 %v86, %v177
  %v179 = vpop.f32.mrb[0].mxu0
  %v180 = vpop.f32.mrb[0].mxu0
  %v181 = vadd.f32 %v86, %v180
  %v182 = vpop.f32.mrb[0].mxu0
  %183 = vmatprep.mubr.bf16.mxu0 0
  %184 = vmatmul.mubr.bf16.gmra.mrb[0].mxu0 %v125
  %v185 = vpop.f32.mrb[0].mxu0
  %v186 = vadd.f32 %v86, %v185
  %v187 = vpop.f32.mrb[0].mxu0
  %v188 = vpop.f32.mrb[0].mxu0
  %v189 = vadd.f32 %v86, %v188
  %v190 = vpop.f32.mrb[0].mxu0
  %191 = vdwg.mxu0
  %v192 = vld [vmem:[%s1] sm:$0xf]
  %v193 = vld [vmem:[%s1 + $0x4] sm:$0xf]
  %v194 = vld [vmem:[%s1 + $0x8] sm:$0xf]
  %v195 = vld [vmem:[%s1 + $0xc] sm:$0xf]
  %v196 = vld [vmem:[%s1 + $0x10] sm:$0xf]
  %v197 = vld [vmem:[%s1 + $0x14] sm:$0xf]
  %v198 = vld [vmem:[%s1 + $0x18] sm:$0xf]
  %v199 = vld [vmem:[%s1 + $0x1c] sm:$0xf]
  %v200 = vunpack.c.l.bf16 %v192
  %v201 = vunpack.c.l.bf16 %v193
  %v202 = vunpack.c.l.bf16 %v194
  %v203 = vunpack.c.l.bf16 %v195
  %v204 = vunpack.c.l.bf16 %v196
  %v205 = vunpack.c.l.bf16 %v197
  %v206 = vunpack.c.l.bf16 %v198
  %v207 = vunpack.c.l.bf16 %v199
  %vm208 = vcmask 64512
  %v209 = vsel %vm208, %v200, 0.0
  %v210 = vsel %vm208, %v201, 0.0
  %v211 = vadd.f32 %v209, %v210
  %v212 = vsel %vm208, %v202, 0.0
  %v213 = vadd.f32 %v211, %v212
  %v214 = vsel %vm208, %v203, 0.0
  %v215 = vadd.f32 %v213, %v214
  %v216 = vsel %vm208, %v204, 0.0
  %v217 = vadd.f32 %v215, %v216
  %v218 = vsel %vm208, %v205, 0.0
  %v219 = vadd.f32 %v217, %v218
  %v220 = vsel %vm208, %v206, 0.0
  %v221 = vadd.f32 %v219, %v220
  %v222 = vsel %vm208, %v207, 0.0
  %v223 = vadd.f32 %v221, %v222
  %v224 = vrot.slane %v223, 4
  %v225 = vadd.f32 %v223, %v224
  %v226 = vrot.slane %v225, 2
  %v227 = vadd.f32 %v225, %v226
  %v228 = vrot.slane %v227, 1
  %v229 = vadd.f32 %v227, %v228
  %v230 = vmul.f32 %v229, 0.015625
  %v231 = vsub.f32 %v200, %v230
  %v232 = vsub.f32 %v201, %v230
  %v233 = vsub.f32 %v202, %v230
  %v234 = vsub.f32 %v203, %v230
  %v235 = vsub.f32 %v204, %v230
  %v236 = vsub.f32 %v205, %v230
  %v237 = vsub.f32 %v206, %v230
  %v238 = vsub.f32 %v207, %v230
  %v239 = vmul.f32 %v231, %v231
  %v240 = vmul.f32 %v232, %v232
  %v241 = vmul.f32 %v233, %v233
  %v242 = vmul.f32 %v234, %v234
  %v243 = vmul.f32 %v235, %v235
  %v244 = vmul.f32 %v236, %v236
  %v245 = vmul.f32 %v237, %v237
  %v246 = vmul.f32 %v238, %v238
  %v247 = vsel %vm208, %v239, 0.0
  %v248 = vsel %vm208, %v240, 0.0
  %v249 = vadd.f32 %v247, %v248
  %v250 = vsel %vm208, %v241, 0.0
  %v251 = vadd.f32 %v249, %v250
  %v252 = vsel %vm208, %v242, 0.0
  %v253 = vadd.f32 %v251, %v252
  %v254 = vsel %vm208, %v243, 0.0
  %v255 = vadd.f32 %v253, %v254
  %v256 = vsel %vm208, %v244, 0.0
  %v257 = vadd.f32 %v255, %v256
  %v258 = vsel %vm208, %v245, 0.0
  %v259 = vadd.f32 %v257, %v258
  %v260 = vsel %vm208, %v246, 0.0
  %v261 = vadd.f32 %v259, %v260
  %v262 = vrot.slane %v261, 4
  %v263 = vadd.f32 %v261, %v262
  %v264 = vrot.slane %v263, 2
  %v265 = vadd.f32 %v263, %v264
  %v266 = vrot.slane %v265, 1
  %v267 = vadd.f32 %v265, %v266
  %v268 = vmul.f32 %v267, 0.015625
  %v269 = vld [vmem:[%s4] sm:$0x1]
  %v270 = vadd.f32 %v268, 1e-05
  %v271 = vrsqrt.pop %v270
  %v272 = vmul.f32 %v269, %v271
  %v274 = vlaneseq
  %v275 = vshrl.u32 %v274, 7
  %v276 = vsub.s32 0, %v275
  %v277 = vrot.slane %v272, %v276
  %v279 = vmul.f32 %v231, %v277
  %v280 = vmul.f32 %v232, %v277
  %v281 = vmul.f32 %v233, %v277
  %v282 = vmul.f32 %v234, %v277
  %v283 = vmul.f32 %v235, %v277
  %v284 = vmul.f32 %v236, %v277
  %v285 = vmul.f32 %v237, %v277
  %v286 = vmul.f32 %v238, %v277
  %v287 = vld [vmem:[%s5] sm:$0x1]
  %v289 = vlaneseq
  %v290 = vshrl.u32 %v289, 7
  %v291 = vsub.s32 0, %v290
  %v292 = vrot.slane %v287, %v291
  %v294 = vadd.f32 %v279, %v292
  %v295 = vadd.f32 %v280, %v292
  %v296 = vadd.f32 %v281, %v292
  %v297 = vadd.f32 %v282, %v292
  %v298 = vadd.f32 %v283, %v292
  %v299 = vadd.f32 %v284, %v292
  %v300 = vadd.f32 %v285, %v292
  %v301 = vadd.f32 %v286, %v292
  %v302 = vmax.f32 %v294, 0.0
  %v303 = vmax.f32 %v295, 0.0
  %v304 = vmax.f32 %v296, 0.0
  %v305 = vmax.f32 %v297, 0.0
  %v306 = vmax.f32 %v298, 0.0
  %v307 = vmax.f32 %v299, 0.0
  %v308 = vmax.f32 %v300, 0.0
  %v309 = vmax.f32 %v301, 0.0
  %v310 = vsel %vm208, %v162, 0.0
  %v311 = vsel %vm208, %v165, 0.0
  %v312 = vadd.f32 %v310, %v311
  %v313 = vsel %vm208, %v170, 0.0
  %v314 = vadd.f32 %v312, %v313
  %v315 = vsel %vm208, %v173, 0.0
  %v316 = vadd.f32 %v314, %v315
  %v317 = vsel %vm208, %v178, 0.0
  %v318 = vadd.f32 %v316, %v317
  %v319 = vsel %vm208, %v181, 0.0
  %v320 = vadd.f32 %v318, %v319
  %v321 = vsel %vm208, %v186, 0.0
  %v322 = vadd.f32 %v320, %v321
  %v323 = vsel %vm208, %v189, 0.0
  %v324 = vadd.f32 %v322, %v323
  %v325 = vrot.slane %v324, 4
  %v326 = vadd.f32 %v324, %v325
  %v327 = vrot.slane %v326, 2
  %v328 = vadd.f32 %v326, %v327
  %v329 = vrot.slane %v328, 1
  %v330 = vadd.f32 %v328, %v329
  %v331 = vmul.f32 %v330, 0.015625
  %v332 = vsub.f32 %v162, %v331
  %v333 = vsub.f32 %v165, %v331
  %v334 = vsub.f32 %v170, %v331
  %v335 = vsub.f32 %v173, %v331
  %v336 = vsub.f32 %v178, %v331
  %v337 = vsub.f32 %v181, %v331
  %v338 = vsub.f32 %v186, %v331
  %v339 = vsub.f32 %v189, %v331
  %v340 = vmul.f32 %v332, %v332
  %v341 = vmul.f32 %v333, %v333
  %v342 = vmul.f32 %v334, %v334
  %v343 = vmul.f32 %v335, %v335
  %v344 = vmul.f32 %v336, %v336
  %v345 = vmul.f32 %v337, %v337
  %v346 = vmul.f32 %v338, %v338
  %v347 = vmul.f32 %v339, %v339
  %v348 = vsel %vm208, %v340, 0.0
  %v349 = vsel %vm208, %v341, 0.0
  %v350 = vadd.f32 %v348, %v349
  %v351 = vsel %vm208, %v342, 0.0
  %v352 = vadd.f32 %v350, %v351
  %v353 = vsel %vm208, %v343, 0.0
  %v354 = vadd.f32 %v352, %v353
  %v355 = vsel %vm208, %v344, 0.0
  %v356 = vadd.f32 %v354, %v355
  %v357 = vsel %vm208, %v345, 0.0
  %v358 = vadd.f32 %v356, %v357
  %v359 = vsel %vm208, %v346, 0.0
  %v360 = vadd.f32 %v358, %v359
  %v361 = vsel %vm208, %v347, 0.0
  %v362 = vadd.f32 %v360, %v361
  %v363 = vrot.slane %v362, 4
  %v364 = vadd.f32 %v362, %v363
  %v365 = vrot.slane %v364, 2
  %v366 = vadd.f32 %v364, %v365
  %v367 = vrot.slane %v366, 1
  %v368 = vadd.f32 %v366, %v367
  %v369 = vmul.f32 %v368, 0.015625
  %v370 = vld [vmem:[%s6] sm:$0x1]
  %v371 = vadd.f32 %v369, 1e-05
  %v372 = vrsqrt.pop %v371
  %v373 = vmul.f32 %v370, %v372
  %v375 = vlaneseq
  %v376 = vshrl.u32 %v375, 7
  %v377 = vsub.s32 0, %v376
  %v378 = vrot.slane %v373, %v377
  %v380 = vmul.f32 %v332, %v378
  %v381 = vmul.f32 %v333, %v378
  %v382 = vmul.f32 %v334, %v378
  %v383 = vmul.f32 %v335, %v378
  %v384 = vmul.f32 %v336, %v378
  %v385 = vmul.f32 %v337, %v378
  %v386 = vmul.f32 %v338, %v378
  %v387 = vmul.f32 %v339, %v378
  %v388 = vld [vmem:[%s7] sm:$0x1]
  %v390 = vlaneseq
  %v391 = vshrl.u32 %v390, 7
  %v392 = vsub.s32 0, %v391
  %v393 = vrot.slane %v388, %v392
  %v395 = vadd.f32 %v380, %v393
  %v396 = vadd.f32 %v381, %v393
  %v397 = vadd.f32 %v382, %v393
  %v398 = vadd.f32 %v383, %v393
  %v399 = vadd.f32 %v384, %v393
  %v400 = vadd.f32 %v385, %v393
  %v401 = vadd.f32 %v386, %v393
  %v402 = vadd.f32 %v387, %v393
  %v403 = vmax.f32 %v395, 0.0
  %v404 = vmax.f32 %v396, 0.0
  %v405 = vmax.f32 %v397, 0.0
  %v406 = vmax.f32 %v398, 0.0
  %v407 = vmax.f32 %v399, 0.0
  %v408 = vmax.f32 %v400, 0.0
  %v409 = vmax.f32 %v401, 0.0
  %v410 = vmax.f32 %v402, 0.0
  %419 = vrot.lane.b32.xlu0 %v403, 8
  %v420 = vpop.permute.xlu0 %419
  %421 = vrot.lane.b32.xlu0 %v404, 8
  %v422 = vpop.permute.xlu0 %421
  %423 = vrot.lane.b32.xlu0 %v405, 8
  %v424 = vpop.permute.xlu0 %423
  %425 = vrot.lane.b32.xlu0 %v406, 8
  %v426 = vpop.permute.xlu0 %425
  %427 = vrot.lane.b32.xlu0 %v407, 8
  %v428 = vpop.permute.xlu0 %427
  %429 = vrot.lane.b32.xlu0 %v408, 8
  %v430 = vpop.permute.xlu0 %429
  %431 = vrot.lane.b32.xlu0 %v409, 8
  %v432 = vpop.permute.xlu0 %431
  %433 = vrot.lane.b32.xlu0 %v410, 8
  %v434 = vpop.permute.xlu0 %433
  %v443 = vsel %vm208, %v302, %v420
  %v444 = vsel %vm208, %v303, %v422
  %v445 = vsel %vm208, %v304, %v424
  %v446 = vsel %vm208, %v305, %v426
  %v447 = vsel %vm208, %v306, %v428
  %v448 = vsel %vm208, %v307, %v430
  %v449 = vsel %vm208, %v308, %v432
  %v450 = vsel %vm208, %v309, %v434
  %v451 = vpack.c.bf16 %v444, %v443
  %v452 = vpack.c.bf16 %v446, %v445
  %v453 = vpack.c.bf16 %v448, %v447
  %v454 = vpack.c.bf16 %v450, %v449
  %v459 = vunpack.c.l.b16 %v451
  %v460 = vunpack.c.h.b16 %v451
  %v461 = vunpack.c.l.b16 %v452
  %v462 = vunpack.c.h.b16 %v452
  %v463 = vunpack.c.l.b16 %v453
  %v464 = vunpack.c.h.b16 %v453
  %v465 = vunpack.c.l.b16 %v454
  %v466 = vunpack.c.h.b16 %v454
  %v467 = vpack.c.b16 %v459, %v459
  %v468 = vpack.c.b16 %v460, %v460
  %v469 = vpack.c.b16 %v461, %v461
  %v470 = vpack.c.b16 %v462, %v462
  %v471 = vpack.c.b16 %v463, %v463
  %v472 = vpack.c.b16 %v464, %v464
  %v473 = vpack.c.b16 %v465, %v465
  %v474 = vpack.c.b16 %v466, %v466
  %vm475 = vsmask.f32 4368
  %vm476 = vmor %vm55, %vm475
  %v478 = vshrl.u32 %v467, 16
  %v480 = vrot.slane %v478, 7
  %v481 = vshll.u32 %v467, 16
  %v483 = vor.u32 %v480, %v481
  %v484 = vrot.slane %v480, 4
  %v486 = vshrl.u32 %v468, 16
  %v488 = vrot.slane %v486, 7
  %v489 = vshll.u32 %v468, 16
  %v491 = vor.u32 %v488, %v489
  %v492 = vsel %vm476, %v484, %v491
  %v493 = vrot.slane %v488, 4
  %v495 = vshrl.u32 %v469, 16
  %v497 = vrot.slane %v495, 7
  %v498 = vshll.u32 %v469, 16
  %v500 = vor.u32 %v497, %v498
  %v501 = vsel %vm476, %v493, %v500
  %v502 = vrot.slane %v497, 4
  %v504 = vshrl.u32 %v470, 16
  %v506 = vrot.slane %v504, 7
  %v507 = vshll.u32 %v470, 16
  %v509 = vor.u32 %v506, %v507
  %v510 = vsel %vm476, %v502, %v509
  %v511 = vrot.slane %v506, 4
  %v513 = vshrl.u32 %v471, 16
  %v515 = vrot.slane %v513, 7
  %v516 = vshll.u32 %v471, 16
  %v518 = vor.u32 %v515, %v516
  %v519 = vrot.slane %v515, 4
  %v521 = vshrl.u32 %v472, 16
  %v523 = vrot.slane %v521, 7
  %v524 = vshll.u32 %v472, 16
  %v526 = vor.u32 %v523, %v524
  %v527 = vsel %vm476, %v519, %v526
  %v528 = vrot.slane %v523, 4
  %v530 = vshrl.u32 %v473, 16
  %v532 = vrot.slane %v530, 7
  %v533 = vshll.u32 %v473, 16
  %v535 = vor.u32 %v532, %v533
  %v536 = vsel %vm476, %v528, %v535
  %v537 = vrot.slane %v532, 4
  %v539 = vshrl.u32 %v474, 16
  %v541 = vrot.slane %v539, 7
  %v542 = vshll.u32 %v474, 16
  %v544 = vor.u32 %v541, %v542
  %v545 = vsel %vm476, %v537, %v544
  %v546 = vrot.slane %v541, 4
  %vm557 = vcmask 125952
  %vm558 = vmand %vm557, %vm63
  %v559 = vld [vmem:[#allocation2] sm:$0xf]
  %v560 = vsel %vm558, %v483, %v559
  %561 = vst [vmem:[#allocation2] sm:$0xf] %v560
  %vm562 = vcmask 125952
  %563 = vst.msk [vmem:[#allocation2 + $0x4] sm:$0xf] %vm562, %v492
  %564 = vst.msk [vmem:[#allocation2 + $0x8] sm:$0xf] %vm562, %v501
  %565 = vst.msk [vmem:[#allocation2 + $0xc] sm:$0xf] %vm562, %v510
  %v566 = vld [vmem:[#allocation2 + $0x10] sm:$0x1]
  %v567 = vsel %vm56, %v511, %v566
  %568 = vst [vmem:[#allocation2 + $0x10] sm:$0x1] %v567
  %v569 = vld [vmem:[#allocation2 + $0x14] sm:$0xf]
  %v570 = vsel %vm558, %v518, %v569
  %571 = vst [vmem:[#allocation2 + $0x14] sm:$0xf] %v570
  %572 = vst.msk [vmem:[#allocation2 + $0x18] sm:$0xf] %vm562, %v527
  %573 = vst.msk [vmem:[#allocation2 + $0x1c] sm:$0xf] %vm562, %v536
  %574 = vst.msk [vmem:[#allocation2 + $0x20] sm:$0xf] %vm562, %v545
  %v575 = vld [vmem:[#allocation2 + $0x24] sm:$0x1]
  %v576 = vsel %vm56, %v546, %v575
  %577 = vst [vmem:[#allocation2 + $0x24] sm:$0x1] %v576
  %v578 = vld [vmem:[%s8 + $0x8] sm:$0xf]
  %v579 = vld [vmem:[%s8 + $0xc] sm:$0xf]
  %v580 = vld [vmem:[#allocation2] sm:$0xf]
  %v581 = vld [vmem:[#allocation2 + $0x4] sm:$0xf]
  %v582 = vld [vmem:[#allocation2 + $0x8] sm:$0xf]
  %v583 = vld [vmem:[#allocation2 + $0xc] sm:$0xf]
  %v584 = vld [vmem:[#allocation2 + $0x14] sm:$0xf]
  %v585 = vld [vmem:[#allocation2 + $0x18] sm:$0xf]
  %v586 = vld [vmem:[#allocation2 + $0x1c] sm:$0xf]
  %v587 = vld [vmem:[#allocation2 + $0x20] sm:$0xf]
  %v588 = vld [vmem:[%s8] sm:$0xf]
  %v589 = vld [vmem:[%s8 + $0x4] sm:$0xf]
  %v598 = vunpack.c.l.b16 %v580
  %v599 = vunpack.c.l.b16 %v581
  %v600 = vunpack.c.l.b16 %v582
  %v601 = vunpack.c.l.b16 %v583
  %v602 = vunpack.c.l.b16 %v584
  %v603 = vunpack.c.l.b16 %v585
  %v604 = vunpack.c.l.b16 %v586
  %v605 = vunpack.c.l.b16 %v587
  %v606 = vpack.c.b16 %v599, %v598
  %v607 = vpack.c.b16 %v601, %v600
  %v608 = vpack.c.b16 %v603, %v602
  %v609 = vpack.c.b16 %v605, %v604
  %v612 = vunpack.c.l.b16 %v588
  %v613 = vunpack.c.l.b16 %v589
  %v614 = vpack.c.b16 %v613, %v612
  %v617 = vsel %vm114, %v606, 0
  %v620 = vsel %vm114, %v607, 0
  %v623 = vsel %vm114, %v608, 0
  %v626 = vsel %vm114, %v609, 0
  %628 = vmatprep.subr.bf16.mxu0 0
  %629 = vmatpush1.bf16.msra.mxu0 %v614
  %630 = vmatprep.subr.bf16.mxu0 0
  %631 = vmatpush1.bf16.msra.mxu0 0
  %632 = vmatprep.subr.bf16.mxu0 0
  %633 = vmatpush1.bf16.msra.mxu0 0
  %634 = vmatprep.subr.bf16.mxu0 0
  %635 = vmatpush1.bf16.msra.mxu0 0
  %636 = vmatprep.subr.bf16.mxu0 0
  %637 = vmatpush1.bf16.msra.mxu0 0
  %638 = vmatprep.subr.bf16.mxu0 0
  %639 = vmatpush1.bf16.msra.mxu0 0
  %640 = vmatprep.subr.bf16.mxu0 0
  %641 = vmatpush1.bf16.msra.mxu0 0
  %642 = vmatprep.subr.bf16.mxu0 0
  %643 = vmatpush1.bf16.msra.mxu0 0
  %644 = vmatprep.subr.bf16.mxu0 0
  %645 = vmatpush1.bf16.msra.mxu0 0
  %646 = vmatprep.subr.bf16.mxu0 0
  %647 = vmatpush1.bf16.msra.mxu0 0
  %648 = vmatprep.subr.bf16.mxu0 0
  %649 = vmatpush1.bf16.msra.mxu0 0
  %650 = vmatprep.subr.bf16.mxu0 0
  %651 = vmatpush1.bf16.msra.mxu0 0
  %652 = vmatprep.subr.bf16.mxu0 0
  %653 = vmatpush1.bf16.msra.mxu0 0
  %654 = vmatprep.subr.bf16.mxu0 0
  %655 = vmatpush1.bf16.msra.mxu0 0
  %656 = vmatprep.subr.bf16.mxu0 0
  %657 = vmatpush1.bf16.msra.mxu0 0
  %658 = vmatprep.subr.bf16.mxu0 0
  %659 = vmatpush1.bf16.msra.mxu0 0
  %660 = vmatprep.mubr.bf16.mxu0 0
  %661 = vmatmul.mubr.bf16.gmra.mrb[0].mxu0 %v617
  %v662 = vpop.f32.mrb[0].mxu0
  %v663 = vadd.f32 0.0, %v662
  %v664 = vpop.f32.mrb[0].mxu0
  %v665 = vpop.f32.mrb[0].mxu0
  %v666 = vadd.f32 0.0, %v665
  %v667 = vpop.f32.mrb[0].mxu0
  %668 = vmatprep.mubr.bf16.mxu0 0
  %669 = vmatmul.mubr.bf16.gmra.mrb[0].mxu0 %v620
  %v670 = vpop.f32.mrb[0].mxu0
  %v671 = vadd.f32 0.0, %v670
  %v672 = vpop.f32.mrb[0].mxu0
  %v673 = vpop.f32.mrb[0].mxu0
  %v674 = vadd.f32 0.0, %v673
  %v675 = vpop.f32.mrb[0].mxu0
  %676 = vmatprep.mubr.bf16.mxu0 0
  %677 = vmatmul.mubr.bf16.gmra.mrb[0].mxu0 %v623
  %v678 = vpop.f32.mrb[0].mxu0
  %v679 = vadd.f32 0.0, %v678
  %v680 = vpop.f32.mrb[0].mxu0
  %v681 = vpop.f32.mrb[0].mxu0
  %v682 = vadd.f32 0.0, %v681
  %v683 = vpop.f32.mrb[0].mxu0
  %684 = vmatprep.mubr.bf16.mxu0 0
  %685 = vmatmul.mubr.bf16.gmra.mrb[0].mxu0 %v626
  %v686 = vpop.f32.mrb[0].mxu0
  %v687 = vadd.f32 0.0, %v686
  %v688 = vpop.f32.mrb[0].mxu0
  %v689 = vpop.f32.mrb[0].mxu0
  %v690 = vadd.f32 0.0, %v689
  %v691 = vpop.f32.mrb[0].mxu0
  %692 = vdwg.mxu0
  %v695 = vunpack.c.l.b16 %v578
  %v696 = vunpack.c.l.b16 %v579
  %v697 = vpack.c.b16 %v696, %v695
  %v700 = vsel %vm114, %v451, 0
  %v703 = vsel %vm114, %v452, 0
  %v706 = vsel %vm114, %v453, 0
  %v709 = vsel %vm114, %v454, 0
  %711 = vmatprep.subr.bf16.mxu0 0
  %712 = vmatpush1.bf16.msra.mxu0 %v697
  %713 = vmatprep.subr.bf16.mxu0 0
  %714 = vmatpush1.bf16.msra.mxu0 0
  %715 = vmatprep.subr.bf16.mxu0 0
  %716 = vmatpush1.bf16.msra.mxu0 0
  %717 = vmatprep.subr.bf16.mxu0 0
  %718 = vmatpush1.bf16.msra.mxu0 0
  %719 = vmatprep.subr.bf16.mxu0 0
  %720 = vmatpush1.bf16.msra.mxu0 0
  %721 = vmatprep.subr.bf16.mxu0 0
  %722 = vmatpush1.bf16.msra.mxu0 0
  %723 = vmatprep.subr.bf16.mxu0 0
  %724 = vmatpush1.bf16.msra.mxu0 0
  %725 = vmatprep.subr.bf16.mxu0 0
  %726 = vmatpush1.bf16.msra.mxu0 0
  %727 = vmatprep.subr.bf16.mxu0 0
  %728 = vmatpush1.bf16.msra.mxu0 0
  %729 = vmatprep.subr.bf16.mxu0 0
  %730 = vmatpush1.bf16.msra.mxu0 0
  %731 = vmatprep.subr.bf16.mxu0 0
  %732 = vmatpush1.bf16.msra.mxu0 0
  %733 = vmatprep.subr.bf16.mxu0 0
  %734 = vmatpush1.bf16.msra.mxu0 0
  %735 = vmatprep.subr.bf16.mxu0 0
  %736 = vmatpush1.bf16.msra.mxu0 0
  %737 = vmatprep.subr.bf16.mxu0 0
  %738 = vmatpush1.bf16.msra.mxu0 0
  %739 = vmatprep.subr.bf16.mxu0 0
  %740 = vmatpush1.bf16.msra.mxu0 0
  %741 = vmatprep.subr.bf16.mxu0 0
  %742 = vmatpush1.bf16.msra.mxu0 0
  %743 = vmatprep.mubr.bf16.mxu0 0
  %744 = vmatmul.mubr.bf16.gmra.mrb[0].mxu0 %v700
  %v745 = vpop.f32.mrb[0].mxu0
  %v746 = vadd.f32 %v663, %v745
  %v747 = vpop.f32.mrb[0].mxu0
  %v748 = vpop.f32.mrb[0].mxu0
  %v749 = vadd.f32 %v666, %v748
  %v750 = vpop.f32.mrb[0].mxu0
  %751 = vmatprep.mubr.bf16.mxu0 0
  %752 = vmatmul.mubr.bf16.gmra.mrb[0].mxu0 %v703
  %v753 = vpop.f32.mrb[0].mxu0
  %v754 = vadd.f32 %v671, %v753
  %v755 = vpop.f32.mrb[0].mxu0
  %v756 = vpop.f32.mrb[0].mxu0
  %v757 = vadd.f32 %v674, %v756
  %v758 = vpop.f32.mrb[0].mxu0
  %759 = vmatprep.mubr.bf16.mxu0 0
  %760 = vmatmul.mubr.bf16.gmra.mrb[0].mxu0 %v706
  %v761 = vpop.f32.mrb[0].mxu0
  %v762 = vadd.f32 %v679, %v761
  %v763 = vpop.f32.mrb[0].mxu0
  %v764 = vpop.f32.mrb[0].mxu0
  %v765 = vadd.f32 %v682, %v764
  %v766 = vpop.f32.mrb[0].mxu0
  %767 = vmatprep.mubr.bf16.mxu0 0
  %768 = vmatmul.mubr.bf16.gmra.mrb[0].mxu0 %v709
  %v769 = vpop.f32.mrb[0].mxu0
  %v770 = vadd.f32 %v687, %v769
  %v771 = vpop.f32.mrb[0].mxu0
  %v772 = vpop.f32.mrb[0].mxu0
  %v773 = vadd.f32 %v690, %v772
  %v774 = vpop.f32.mrb[0].mxu0
  %775 = vdwg.mxu0
  %v776 = vld [vmem:[#allocation2] sm:$0xe]
  %v777 = vld [vmem:[#allocation2 + $0x4] sm:$0xf]
  %v778 = vld [vmem:[#allocation2 + $0x8] sm:$0xf]
  %v779 = vld [vmem:[#allocation2 + $0xc] sm:$0xf]
  %v780 = vld [vmem:[#allocation2 + $0x10] sm:$0x1]
  %v781 = vld [vmem:[#allocation2 + $0x14] sm:$0xe]
  %v782 = vld [vmem:[#allocation2 + $0x18] sm:$0xf]
  %v783 = vld [vmem:[#allocation2 + $0x1c] sm:$0xf]
  %v784 = vld [vmem:[#allocation2 + $0x20] sm:$0xf]
  %v785 = vld [vmem:[#allocation2 + $0x24] sm:$0x1]
  %vm796 = vcmask 1042432
  %vm797 = vcmask 1046532
  %vm798 = vmor %vm796, %vm797
  %v799 = vrot.slane %v776, 5
  %v800 = vrot.slane %v799, 4
  %v801 = vrot.slane %v777, 5
  %v802 = vsel %vm798, %v800, %v801
  %v803 = vrot.slane %v801, 4
  %v804 = vrot.slane %v778, 5
  %v805 = vsel %vm798, %v803, %v804
  %v806 = vrot.slane %v804, 4
  %v807 = vrot.slane %v779, 5
  %v808 = vsel %vm798, %v806, %v807
  %v809 = vrot.slane %v807, 4
  %v810 = vrot.slane %v780, 5
  %v811 = vsel %vm798, %v809, %v810
  %v812 = vrot.slane %v781, 5
  %v813 = vrot.slane %v812, 4
  %v814 = vrot.slane %v782, 5
  %v815 = vsel %vm798, %v813, %v814
  %v816 = vrot.slane %v814, 4
  %v817 = vrot.slane %v783, 5
  %v818 = vsel %vm798, %v816, %v817
  %v819 = vrot.slane %v817, 4
  %v820 = vrot.slane %v784, 5
  %v821 = vsel %vm798, %v819, %v820
  %v822 = vrot.slane %v820, 4
  %v823 = vrot.slane %v785, 5
  %v824 = vsel %vm798, %v822, %v823
  %v825 = vld [vmem:[%s8 + $0x10] sm:$0xf]
  %v826 = vld [vmem:[%s8 + $0x14] sm:$0xf]
  %v827 = vunpack.c.l.b16 %v802
  %v828 = vunpack.c.l.b16 %v805
  %v829 = vunpack.c.l.b16 %v808
  %v830 = vunpack.c.l.b16 %v811
  %v831 = vunpack.c.l.b16 %v815
  %v832 = vunpack.c.l.b16 %v818
  %v833 = vunpack.c.l.b16 %v821
  %v834 = vunpack.c.l.b16 %v824
  %v835 = vpack.c.b16 %v828, %v827
  %v836 = vpack.c.b16 %v830, %v829
  %v837 = vpack.c.b16 %v832, %v831
  %v838 = vpack.c.b16 %v834, %v833
  %v841 = vunpack.c.l.b16 %v825
  %v842 = vunpack.c.l.b16 %v826
  %v843 = vpack.c.b16 %v842, %v841
  %v846 = vsel %vm114, %v835, 0
  %v849 = vsel %vm114, %v836, 0
  %v852 = vsel %vm114, %v837, 0
  %v855 = vsel %vm114, %v838, 0
  %857 = vmatprep.subr.bf16.mxu0 0
  %858 = vmatpush1.bf16.msra.mxu0 %v843
  %859 = vmatprep.subr.bf16.mxu0 0
  %860 = vmatpush1.bf16.msra.mxu0 0
  %861 = vmatprep.subr.bf16.mxu0 0
  %862 = vmatpush1.bf16.msra.mxu0 0
  %863 = vmatprep.subr.bf16.mxu0 0
  %864 = vmatpush1.bf16.msra.mxu0 0
  %865 = vmatprep.subr.bf16.mxu0 0
  %866 = vmatpush1.bf16.msra.mxu0 0
  %867 = vmatprep.subr.bf16.mxu0 0
  %868 = vmatpush1.bf16.msra.mxu0 0
  %869 = vmatprep.subr.bf16.mxu0 0
  %870 = vmatpush1.bf16.msra.mxu0 0
  %871 = vmatprep.subr.bf16.mxu0 0
  %872 = vmatpush1.bf16.msra.mxu0 0
  %873 = vmatprep.subr.bf16.mxu0 0
  %874 = vmatpush1.bf16.msra.mxu0 0
  %875 = vmatprep.subr.bf16.mxu0 0
  %876 = vmatpush1.bf16.msra.mxu0 0
  %877 = vmatprep.subr.bf16.mxu0 0
  %878 = vmatpush1.bf16.msra.mxu0 0
  %879 = vmatprep.subr.bf16.mxu0 0
  %880 = vmatpush1.bf16.msra.mxu0 0
  %881 = vmatprep.subr.bf16.mxu0 0
  %882 = vmatpush1.bf16.msra.mxu0 0
  %883 = vmatprep.subr.bf16.mxu0 0
  %884 = vmatpush1.bf16.msra.mxu0 0
  %885 = vmatprep.subr.bf16.mxu0 0
  %886 = vmatpush1.bf16.msra.mxu0 0
  %887 = vmatprep.subr.bf16.mxu0 0
  %888 = vmatpush1.bf16.msra.mxu0 0
  %889 = vmatprep.mubr.bf16.mxu0 0
  %890 = vmatmul.mubr.bf16.gmra.mrb[0].mxu0 %v846
  %v891 = vpop.f32.mrb[0].mxu0
  %v892 = vadd.f32 0.0, %v891
  %v893 = vpop.f32.mrb[0].mxu0
  %v894 = vpop.f32.mrb[0].mxu0
  %v895 = vadd.f32 0.0, %v894
  %v896 = vpop.f32.mrb[0].mxu0
  %897 = vmatprep.mubr.bf16.mxu0 0
  %898 = vmatmul.mubr.bf16.gmra.mrb[0].mxu0 %v849
  %v899 = vpop.f32.mrb[0].mxu0
  %v900 = vadd.f32 0.0, %v899
  %v901 = vpop.f32.mrb[0].mxu0
  %v902 = vpop.f32.mrb[0].mxu0
  %v903 = vadd.f32 0.0, %v902
  %v904 = vpop.f32.mrb[0].mxu0
  %905 = vmatprep.mubr.bf16.mxu0 0
  %906 = vmatmul.mubr.bf16.gmra.mrb[0].mxu0 %v852
  %v907 = vpop.f32.mrb[0].mxu0
  %v908 = vadd.f32 0.0, %v907
  %v909 = vpop.f32.mrb[0].mxu0
  %v910 = vpop.f32.mrb[0].mxu0
  %v911 = vadd.f32 0.0, %v910
  %v912 = vpop.f32.mrb[0].mxu0
  %913 = vmatprep.mubr.bf16.mxu0 0
  %914 = vmatmul.mubr.bf16.gmra.mrb[0].mxu0 %v855
  %v915 = vpop.f32.mrb[0].mxu0
  %v916 = vadd.f32 0.0, %v915
  %v917 = vpop.f32.mrb[0].mxu0
  %v918 = vpop.f32.mrb[0].mxu0
  %v919 = vadd.f32 0.0, %v918
  %v920 = vpop.f32.mrb[0].mxu0
  %921 = vdwg.mxu0
  %v922 = vadd.f32 %v746, %v892
  %v923 = vadd.f32 %v749, %v895
  %v924 = vadd.f32 %v754, %v900
  %v925 = vadd.f32 %v757, %v903
  %v926 = vadd.f32 %v762, %v908
  %v927 = vadd.f32 %v765, %v911
  %v928 = vadd.f32 %v770, %v916
  %v929 = vadd.f32 %v773, %v919
  %v930 = vld [vmem:[%s9] sm:$0x1]
  %v932 = vlaneseq
  %v933 = vshrl.u32 %v932, 7
  %v934 = vsub.s32 0, %v933
  %v935 = vrot.slane %v930, %v934
  %v937 = vadd.f32 %v922, %v935
  %v938 = vadd.f32 %v923, %v935
  %v939 = vadd.f32 %v924, %v935
  %v940 = vadd.f32 %v925, %v935
  %v941 = vadd.f32 %v926, %v935
  %v942 = vadd.f32 %v927, %v935
  %v943 = vadd.f32 %v928, %v935
  %v944 = vadd.f32 %v929, %v935
  %v945 = vsel %vm114, %v937, 0.0
  %v946 = vsel %vm114, %v938, 0.0
  %v947 = vadd.f32 %v945, %v946
  %v948 = vsel %vm114, %v939, 0.0
  %v949 = vadd.f32 %v947, %v948
  %v950 = vsel %vm114, %v940, 0.0
  %v951 = vadd.f32 %v949, %v950
  %v952 = vsel %vm114, %v941, 0.0
  %v953 = vadd.f32 %v951, %v952
  %v954 = vsel %vm114, %v942, 0.0
  %v955 = vadd.f32 %v953, %v954
  %v956 = vsel %vm114, %v943, 0.0
  %v957 = vadd.f32 %v955, %v956
  %v958 = vsel %vm114, %v944, 0.0
  %v959 = vadd.f32 %v957, %v958
  %v960 = vrot.slane %v959, 4
  %v961 = vadd.f32 %v959, %v960
  %v962 = vrot.slane %v961, 2
  %v963 = vadd.f32 %v961, %v962
  %v964 = vrot.slane %v963, 1
  %v965 = vadd.f32 %v963, %v964
  %v966 = vmul.f32 %v965, 0.015625
  %v967 = vsub.f32 %v937, %v966
  %v968 = vsub.f32 %v938, %v966
  %v969 = vsub.f32 %v939, %v966
  %v970 = vsub.f32 %v940, %v966
  %v971 = vsub.f32 %v941, %v966
  %v972 = vsub.f32 %v942, %v966
  %v973 = vsub.f32 %v943, %v966
  %v974 = vsub.f32 %v944, %v966
  %v975 = vmul.f32 %v967, %v967
  %v976 = vmul.f32 %v968, %v968
  %v977 = vmul.f32 %v969, %v969
  %v978 = vmul.f32 %v970, %v970
  %v979 = vmul.f32 %v971, %v971
  %v980 = vmul.f32 %v972, %v972
  %v981 = vmul.f32 %v973, %v973
  %v982 = vmul.f32 %v974, %v974
  %v983 = vsel %vm114, %v975, 0.0
  %v984 = vsel %vm114, %v976, 0.0
  %v985 = vadd.f32 %v983, %v984
  %v986 = vsel %vm114, %v977, 0.0
  %v987 = vadd.f32 %v985, %v986
  %v988 = vsel %vm114, %v978, 0.0
  %v989 = vadd.f32 %v987, %v988
  %v990 = vsel %vm114, %v979, 0.0
  %v991 = vadd.f32 %v989, %v990
  %v992 = vsel %vm114, %v980, 0.0
  %v993 = vadd.f32 %v991, %v992
  %v994 = vsel %vm114, %v981, 0.0
  %v995 = vadd.f32 %v993, %v994
  %v996 = vsel %vm114, %v982, 0.0
  %v997 = vadd.f32 %v995, %v996
  %v998 = vrot.slane %v997, 4
  %v999 = vadd.f32 %v997, %v998
  %v1000 = vrot.slane %v999, 2
  %v1001 = vadd.f32 %v999, %v1000
  %v1002 = vrot.slane %v1001, 1
  %v1003 = vadd.f32 %v1001, %v1002
  %v1004 = vmul.f32 %v1003, 0.015625
  %v1005 = vld [vmem:[%s10] sm:$0x1]
  %v1006 = vadd.f32 %v1004, 1e-05
  %v1007 = vrsqrt.pop %v1006
  %v1008 = vmul.f32 %v1005, %v1007
  %v1010 = vlaneseq
  %v1011 = vshrl.u32 %v1010, 7
  %v1012 = vsub.s32 0, %v1011
  %v1013 = vrot.slane %v1008, %v1012
  %v1015 = vmul.f32 %v967, %v1013
  %v1016 = vmul.f32 %v968, %v1013
  %v1017 = vmul.f32 %v969, %v1013
  %v1018 = vmul.f32 %v970, %v1013
  %v1019 = vmul.f32 %v971, %v1013
  %v1020 = vmul.f32 %v972, %v1013
  %v1021 = vmul.f32 %v973, %v1013
  %v1022 = vmul.f32 %v974, %v1013
  %v1023 = vld [vmem:[%s11] sm:$0x1]
  %v1025 = vlaneseq
  %v1026 = vshrl.u32 %v1025, 7
  %v1027 = vsub.s32 0, %v1026
  %v1028 = vrot.slane %v1023, %v1027
  %v1030 = vadd.f32 %v1015, %v1028
  %v1031 = vadd.f32 %v1016, %v1028
  %v1032 = vadd.f32 %v1017, %v1028
  %v1033 = vadd.f32 %v1018, %v1028
  %v1034 = vadd.f32 %v1019, %v1028
  %v1035 = vadd.f32 %v1020, %v1028
  %v1036 = vadd.f32 %v1021, %v1028
  %v1037 = vadd.f32 %v1022, %v1028
  %v1038 = vmax.f32 %v1030, 0.0
  %v1039 = vmax.f32 %v1031, 0.0
  %v1040 = vmax.f32 %v1032, 0.0
  %v1041 = vmax.f32 %v1033, 0.0
  %v1042 = vmax.f32 %v1034, 0.0
  %v1043 = vmax.f32 %v1035, 0.0
  %v1044 = vmax.f32 %v1036, 0.0
  %v1045 = vmax.f32 %v1037, 0.0
  %v1046 = vpack.c.bf16 %v1039, %v1038
  %v1047 = vpack.c.bf16 %v1041, %v1040
  %v1048 = vpack.c.bf16 %v1043, %v1042
  %v1049 = vpack.c.bf16 %v1045, %v1044
  %v1054 = vunpack.c.l.b16 %v1046
  %v1055 = vunpack.c.h.b16 %v1046
  %v1056 = vunpack.c.l.b16 %v1047
  %v1057 = vunpack.c.h.b16 %v1047
  %v1058 = vunpack.c.l.b16 %v1048
  %v1059 = vunpack.c.h.b16 %v1048
  %v1060 = vunpack.c.l.b16 %v1049
  %v1061 = vunpack.c.h.b16 %v1049
  %v1062 = vpack.c.b16 %v1054, %v1054
  %v1063 = vpack.c.b16 %v1055, %v1055
  %v1064 = vpack.c.b16 %v1056, %v1056
  %v1065 = vpack.c.b16 %v1057, %v1057
  %v1066 = vpack.c.b16 %v1058, %v1058
  %v1067 = vpack.c.b16 %v1059, %v1059
  %v1068 = vpack.c.b16 %v1060, %v1060
  %v1069 = vpack.c.b16 %v1061, %v1061
  %v1071 = vshrl.u32 %v1062, 16
  %v1073 = vrot.slane %v1071, 7
  %v1074 = vshll.u32 %v1062, 16
  %v1076 = vor.u32 %v1073, %v1074
  %v1077 = vrot.slane %v1073, 4
  %v1079 = vshrl.u32 %v1063, 16
  %v1081 = vrot.slane %v1079, 7
  %v1082 = vshll.u32 %v1063, 16
  %v1084 = vor.u32 %v1081, %v1082
  %v1085 = vsel %vm476, %v1077, %v1084
  %v1086 = vrot.slane %v1081, 4
  %v1088 = vshrl.u32 %v1064, 16
  %v1090 = vrot.slane %v1088, 7
  %v1091 = vshll.u32 %v1064, 16
  %v1093 = vor.u32 %v1090, %v1091
  %v1094 = vsel %vm476, %v1086, %v1093
  %v1095 = vrot.slane %v1090, 4
  %v1097 = vshrl.u32 %v1065, 16
  %v1099 = vrot.slane %v1097, 7
  %v1100 = vshll.u32 %v1065, 16
  %v1102 = vor.u32 %v1099, %v1100
  %v1103 = vsel %vm476, %v1095, %v1102
  %v1104 = vrot.slane %v1099, 4
  %v1106 = vshrl.u32 %v1066, 16
  %v1108 = vrot.slane %v1106, 7
  %v1109 = vshll.u32 %v1066, 16
  %v1111 = vor.u32 %v1108, %v1109
  %v1112 = vrot.slane %v1108, 4
  %v1114 = vshrl.u32 %v1067, 16
  %v1116 = vrot.slane %v1114, 7
  %v1117 = vshll.u32 %v1067, 16
  %v1119 = vor.u32 %v1116, %v1117
  %v1120 = vsel %vm476, %v1112, %v1119
  %v1121 = vrot.slane %v1116, 4
  %v1123 = vshrl.u32 %v1068, 16
  %v1125 = vrot.slane %v1123, 7
  %v1126 = vshll.u32 %v1068, 16
  %v1128 = vor.u32 %v1125, %v1126
  %v1129 = vsel %vm476, %v1121, %v1128
  %v1130 = vrot.slane %v1125, 4
  %v1132 = vshrl.u32 %v1069, 16
  %v1134 = vrot.slane %v1132, 7
  %v1135 = vshll.u32 %v1069, 16
  %v1137 = vor.u32 %v1134, %v1135
  %v1138 = vsel %vm476, %v1130, %v1137
  %v1139 = vrot.slane %v1134, 4
  %v1150 = vld [vmem:[#allocation2] sm:$0xf]
  %v1151 = vsel %vm558, %v1076, %v1150
  %1152 = vst [vmem:[#allocation2] sm:$0xf] %v1151
  %1153 = vst.msk [vmem:[#allocation2 + $0x4] sm:$0xf] %vm562, %v1085
  %1154 = vst.msk [vmem:[#allocation2 + $0x8] sm:$0xf] %vm562, %v1094
  %1155 = vst.msk [vmem:[#allocation2 + $0xc] sm:$0xf] %vm562, %v1103
  %v1156 = vld [vmem:[#allocation2 + $0x10] sm:$0x1]
  %v1157 = vsel %vm56, %v1104, %v1156
  %1158 = vst [vmem:[#allocation2 + $0x10] sm:$0x1] %v1157
  %v1159 = vld [vmem:[#allocation2 + $0x14] sm:$0xf]
  %v1160 = vsel %vm558, %v1111, %v1159
  %1161 = vst [vmem:[#allocation2 + $0x14] sm:$0xf] %v1160
  %1162 = vst.msk [vmem:[#allocation2 + $0x18] sm:$0xf] %vm562, %v1120
  %1163 = vst.msk [vmem:[#allocation2 + $0x1c] sm:$0xf] %vm562, %v1129
  %1164 = vst.msk [vmem:[#allocation2 + $0x20] sm:$0xf] %vm562, %v1138
  %v1165 = vld [vmem:[#allocation2 + $0x24] sm:$0x1]
  %v1166 = vsel %vm56, %v1139, %v1165
  %1167 = vst [vmem:[#allocation2 + $0x24] sm:$0x1] %v1166
  %v1168 = vld [vmem:[%s12 + $0x8] sm:$0xf]
  %v1169 = vld [vmem:[%s12 + $0xc] sm:$0xf]
  %v1170 = vld [vmem:[#allocation2] sm:$0xf]
  %v1171 = vld [vmem:[#allocation2 + $0x4] sm:$0xf]
  %v1172 = vld [vmem:[#allocation2 + $0x8] sm:$0xf]
  %v1173 = vld [vmem:[#allocation2 + $0xc] sm:$0xf]
  %v1174 = vld [vmem:[#allocation2 + $0x14] sm:$0xf]
  %v1175 = vld [vmem:[#allocation2 + $0x18] sm:$0xf]
  %v1176 = vld [vmem:[#allocation2 + $0x1c] sm:$0xf]
  %v1177 = vld [vmem:[#allocation2 + $0x20] sm:$0xf]
  %v1178 = vld [vmem:[%s12] sm:$0xf]
  %v1179 = vld [vmem:[%s12 + $0x4] sm:$0xf]
  %v1188 = vunpack.c.l.b16 %v1170
  %v1189 = vunpack.c.l.b16 %v1171
  %v1190 = vunpack.c.l.b16 %v1172
  %v1191 = vunpack.c.l.b16 %v1173
  %v1192 = vunpack.c.l.b16 %v1174
  %v1193 = vunpack.c.l.b16 %v1175
  %v1194 = vunpack.c.l.b16 %v1176
  %v1195 = vunpack.c.l.b16 %v1177
  %v1196 = vpack.c.b16 %v1189, %v1188
  %v1197 = vpack.c.b16 %v1191, %v1190
  %v1198 = vpack.c.b16 %v1193, %v1192
  %v1199 = vpack.c.b16 %v1195, %v1194
  %v1202 = vunpack.c.l.b16 %v1178
  %v1203 = vunpack.c.l.b16 %v1179
  %v1204 = vpack.c.b16 %v1203, %v1202
  %v1207 = vsel %vm114, %v1196, 0
  %v1210 = vsel %vm114, %v1197, 0
  %v1213 = vsel %vm114, %v1198, 0
  %v1216 = vsel %vm114, %v1199, 0
  %1218 = vmatprep.subr.bf16.mxu0 0
  %1219 = vmatpush1.bf16.msra.mxu0 %v1204
  %1220 = vmatprep.subr.bf16.mxu0 0
  %1221 = vmatpush1.bf16.msra.mxu0 0
  %1222 = vmatprep.subr.bf16.mxu0 0
  %1223 = vmatpush1.bf16.msra.mxu0 0
  %1224 = vmatprep.subr.bf16.mxu0 0
  %1225 = vmatpush1.bf16.msra.mxu0 0
  %1226 = vmatprep.subr.bf16.mxu0 0
  %1227 = vmatpush1.bf16.msra.mxu0 0
  %1228 = vmatprep.subr.bf16.mxu0 0
  %1229 = vmatpush1.bf16.msra.mxu0 0
  %1230 = vmatprep.subr.bf16.mxu0 0
  %1231 = vmatpush1.bf16.msra.mxu0 0
  %1232 = vmatprep.subr.bf16.mxu0 0
  %1233 = vmatpush1.bf16.msra.mxu0 0
  %1234 = vmatprep.subr.bf16.mxu0 0
  %1235 = vmatpush1.bf16.msra.mxu0 0
  %1236 = vmatprep.subr.bf16.mxu0 0
  %1237 = vmatpush1.bf16.msra.mxu0 0
  %1238 = vmatprep.subr.bf16.mxu0 0
  %1239 = vmatpush1.bf16.msra.mxu0 0
  %1240 = vmatprep.subr.bf16.mxu0 0
  %1241 = vmatpush1.bf16.msra.mxu0 0
  %1242 = vmatprep.subr.bf16.mxu0 0
  %1243 = vmatpush1.bf16.msra.mxu0 0
  %1244 = vmatprep.subr.bf16.mxu0 0
  %1245 = vmatpush1.bf16.msra.mxu0 0
  %1246 = vmatprep.subr.bf16.mxu0 0
  %1247 = vmatpush1.bf16.msra.mxu0 0
  %1248 = vmatprep.subr.bf16.mxu0 0
  %1249 = vmatpush1.bf16.msra.mxu0 0
  %1250 = vmatprep.mubr.bf16.mxu0 0
  %1251 = vmatmul.mubr.bf16.gmra.mrb[0].mxu0 %v1207
  %v1252 = vpop.f32.mrb[0].mxu0
  %v1253 = vadd.f32 0.0, %v1252
  %v1254 = vpop.f32.mrb[0].mxu0
  %v1255 = vpop.f32.mrb[0].mxu0
  %v1256 = vadd.f32 0.0, %v1255
  %v1257 = vpop.f32.mrb[0].mxu0
  %1258 = vmatprep.mubr.bf16.mxu0 0
  %1259 = vmatmul.mubr.bf16.gmra.mrb[0].mxu0 %v1210
  %v1260 = vpop.f32.mrb[0].mxu0
  %v1261 = vadd.f32 0.0, %v1260
  %v1262 = vpop.f32.mrb[0].mxu0
  %v1263 = vpop.f32.mrb[0].mxu0
  %v1264 = vadd.f32 0.0, %v1263
  %v1265 = vpop.f32.mrb[0].mxu0
  %1266 = vmatprep.mubr.bf16.mxu0 0
  %1267 = vmatmul.mubr.bf16.gmra.mrb[0].mxu0 %v1213
  %v1268 = vpop.f32.mrb[0].mxu0
  %v1269 = vadd.f32 0.0, %v1268
  %v1270 = vpop.f32.mrb[0].mxu0
  %v1271 = vpop.f32.mrb[0].mxu0
  %v1272 = vadd.f32 0.0, %v1271
  %v1273 = vpop.f32.mrb[0].mxu0
  %1274 = vmatprep.mubr.bf16.mxu0 0
  %1275 = vmatmul.mubr.bf16.gmra.mrb[0].mxu0 %v1216
  %v1276 = vpop.f32.mrb[0].mxu0
  %v1277 = vadd.f32 0.0, %v1276
  %v1278 = vpop.f32.mrb[0].mxu0
  %v1279 = vpop.f32.mrb[0].mxu0
  %v1280 = vadd.f32 0.0, %v1279
  %v1281 = vpop.f32.mrb[0].mxu0
  %1282 = vdwg.mxu0
  %v1285 = vunpack.c.l.b16 %v1168
  %v1286 = vunpack.c.l.b16 %v1169
  %v1287 = vpack.c.b16 %v1286, %v1285
  %v1290 = vsel %vm114, %v1046, 0
  %v1293 = vsel %vm114, %v1047, 0
  %v1296 = vsel %vm114, %v1048, 0
  %v1299 = vsel %vm114, %v1049, 0
  %1301 = vmatprep.subr.bf16.mxu0 0
  %1302 = vmatpush1.bf16.msra.mxu0 %v1287
  %1303 = vmatprep.subr.bf16.mxu0 0
  %1304 = vmatpush1.bf16.msra.mxu0 0
  %1305 = vmatprep.subr.bf16.mxu0 0
  %1306 = vmatpush1.bf16.msra.mxu0 0
  %1307 = vmatprep.subr.bf16.mxu0 0
  %1308 = vmatpush1.bf16.msra.mxu0 0
  %1309 = vmatprep.subr.bf16.mxu0 0
  %1310 = vmatpush1.bf16.msra.mxu0 0
  %1311 = vmatprep.subr.bf16.mxu0 0
  %1312 = vmatpush1.bf16.msra.mxu0 0
  %1313 = vmatprep.subr.bf16.mxu0 0
  %1314 = vmatpush1.bf16.msra.mxu0 0
  %1315 = vmatprep.subr.bf16.mxu0 0
  %1316 = vmatpush1.bf16.msra.mxu0 0
  %1317 = vmatprep.subr.bf16.mxu0 0
  %1318 = vmatpush1.bf16.msra.mxu0 0
  %1319 = vmatprep.subr.bf16.mxu0 0
  %1320 = vmatpush1.bf16.msra.mxu0 0
  %1321 = vmatprep.subr.bf16.mxu0 0
  %1322 = vmatpush1.bf16.msra.mxu0 0
  %1323 = vmatprep.subr.bf16.mxu0 0
  %1324 = vmatpush1.bf16.msra.mxu0 0
  %1325 = vmatprep.subr.bf16.mxu0 0
  %1326 = vmatpush1.bf16.msra.mxu0 0
  %1327 = vmatprep.subr.bf16.mxu0 0
  %1328 = vmatpush1.bf16.msra.mxu0 0
  %1329 = vmatprep.subr.bf16.mxu0 0
  %1330 = vmatpush1.bf16.msra.mxu0 0
  %1331 = vmatprep.subr.bf16.mxu0 0
  %1332 = vmatpush1.bf16.msra.mxu0 0
  %1333 = vmatprep.mubr.bf16.mxu0 0
  %1334 = vmatmul.mubr.bf16.gmra.mrb[0].mxu0 %v1290
  %v1335 = vpop.f32.mrb[0].mxu0
  %v1336 = vadd.f32 %v1253, %v1335
  %v1337 = vpop.f32.mrb[0].mxu0
  %v1338 = vpop.f32.mrb[0].mxu0
  %v1339 = vadd.f32 %v1256, %v1338
  %v1340 = vpop.f32.mrb[0].mxu0
  %1341 = vmatprep.mubr.bf16.mxu0 0
  %1342 = vmatmul.mubr.bf16.gmra.mrb[0].mxu0 %v1293
  %v1343 = vpop.f32.mrb[0].mxu0
  %v1344 = vadd.f32 %v1261, %v1343
  %v1345 = vpop.f32.mrb[0].mxu0
  %v1346 = vpop.f32.mrb[0].mxu0
  %v1347 = vadd.f32 %v1264, %v1346
  %v1348 = vpop.f32.mrb[0].mxu0
  %1349 = vmatprep.mubr.bf16.mxu0 0
  %1350 = vmatmul.mubr.bf16.gmra.mrb[0].mxu0 %v1296
  %v1351 = vpop.f32.mrb[0].mxu0
  %v1352 = vadd.f32 %v1269, %v1351
  %v1353 = vpop.f32.mrb[0].mxu0
  %v1354 = vpop.f32.mrb[0].mxu0
  %v1355 = vadd.f32 %v1272, %v1354
  %v1356 = vpop.f32.mrb[0].mxu0
  %1357 = vmatprep.mubr.bf16.mxu0 0
  %1358 = vmatmul.mubr.bf16.gmra.mrb[0].mxu0 %v1299
  %v1359 = vpop.f32.mrb[0].mxu0
  %v1360 = vadd.f32 %v1277, %v1359
  %v1361 = vpop.f32.mrb[0].mxu0
  %v1362 = vpop.f32.mrb[0].mxu0
  %v1363 = vadd.f32 %v1280, %v1362
  %v1364 = vpop.f32.mrb[0].mxu0
  %1365 = vdwg.mxu0
  %v1366 = vld [vmem:[#allocation2] sm:$0xe]
  %v1367 = vld [vmem:[#allocation2 + $0x4] sm:$0xf]
  %v1368 = vld [vmem:[#allocation2 + $0x8] sm:$0xf]
  %v1369 = vld [vmem:[#allocation2 + $0xc] sm:$0xf]
  %v1370 = vld [vmem:[#allocation2 + $0x10] sm:$0x1]
  %v1371 = vld [vmem:[#allocation2 + $0x14] sm:$0xe]
  %v1372 = vld [vmem:[#allocation2 + $0x18] sm:$0xf]
  %v1373 = vld [vmem:[#allocation2 + $0x1c] sm:$0xf]
  %v1374 = vld [vmem:[#allocation2 + $0x20] sm:$0xf]
  %v1375 = vld [vmem:[#allocation2 + $0x24] sm:$0x1]
  %v1386 = vrot.slane %v1366, 5
  %v1387 = vrot.slane %v1386, 4
  %v1388 = vrot.slane %v1367, 5
  %v1389 = vsel %vm798, %v1387, %v1388
  %v1390 = vrot.slane %v1388, 4
  %v1391 = vrot.slane %v1368, 5
  %v1392 = vsel %vm798, %v1390, %v1391
  %v1393 = vrot.slane %v1391, 4
  %v1394 = vrot.slane %v1369, 5
  %v1395 = vsel %vm798, %v1393, %v1394
  %v1396 = vrot.slane %v1394, 4
  %v1397 = vrot.slane %v1370, 5
  %v1398 = vsel %vm798, %v1396, %v1397
  %v1399 = vrot.slane %v1371, 5
  %v1400 = vrot.slane %v1399, 4
  %v1401 = vrot.slane %v1372, 5
  %v1402 = vsel %vm798, %v1400, %v1401
  %v1403 = vrot.slane %v1401, 4
  %v1404 = vrot.slane %v1373, 5
  %v1405 = vsel %vm798, %v1403, %v1404
  %v1406 = vrot.slane %v1404, 4
  %v1407 = vrot.slane %v1374, 5
  %v1408 = vsel %vm798, %v1406, %v1407
  %v1409 = vrot.slane %v1407, 4
  %v1410 = vrot.slane %v1375, 5
  %v1411 = vsel %vm798, %v1409, %v1410
  %v1412 = vld [vmem:[%s12 + $0x10] sm:$0xf]
  %v1413 = vld [vmem:[%s12 + $0x14] sm:$0xf]
  %v1414 = vunpack.c.l.b16 %v1389
  %v1415 = vunpack.c.l.b16 %v1392
  %v1416 = vunpack.c.l.b16 %v1395
  %v1417 = vunpack.c.l.b16 %v1398
  %v1418 = vunpack.c.l.b16 %v1402
  %v1419 = vunpack.c.l.b16 %v1405
  %v1420 = vunpack.c.l.b16 %v1408
  %v1421 = vunpack.c.l.b16 %v1411
  %v1422 = vpack.c.b16 %v1415, %v1414
  %v1423 = vpack.c.b16 %v1417, %v1416
  %v1424 = vpack.c.b16 %v1419, %v1418
  %v1425 = vpack.c.b16 %v1421, %v1420
  %v1428 = vunpack.c.l.b16 %v1412
  %v1429 = vunpack.c.l.b16 %v1413
  %v1430 = vpack.c.b16 %v1429, %v1428
  %v1433 = vsel %vm114, %v1422, 0
  %v1436 = vsel %vm114, %v1423, 0
  %v1439 = vsel %vm114, %v1424, 0
  %v1442 = vsel %vm114, %v1425, 0
  %1444 = vmatprep.subr.bf16.mxu0 0
  %1445 = vmatpush1.bf16.msra.mxu0 %v1430
  %1446 = vmatprep.subr.bf16.mxu0 0
  %1447 = vmatpush1.bf16.msra.mxu0 0
  %1448 = vmatprep.subr.bf16.mxu0 0
  %1449 = vmatpush1.bf16.msra.mxu0 0
  %1450 = vmatprep.subr.bf16.mxu0 0
  %1451 = vmatpush1.bf16.msra.mxu0 0
  %1452 = vmatprep.subr.bf16.mxu0 0
  %1453 = vmatpush1.bf16.msra.mxu0 0
  %1454 = vmatprep.subr.bf16.mxu0 0
  %1455 = vmatpush1.bf16.msra.mxu0 0
  %1456 = vmatprep.subr.bf16.mxu0 0
  %1457 = vmatpush1.bf16.msra.mxu0 0
  %1458 = vmatprep.subr.bf16.mxu0 0
  %1459 = vmatpush1.bf16.msra.mxu0 0
  %1460 = vmatprep.subr.bf16.mxu0 0
  %1461 = vmatpush1.bf16.msra.mxu0 0
  %1462 = vmatprep.subr.bf16.mxu0 0
  %1463 = vmatpush1.bf16.msra.mxu0 0
  %1464 = vmatprep.subr.bf16.mxu0 0
  %1465 = vmatpush1.bf16.msra.mxu0 0
  %1466 = vmatprep.subr.bf16.mxu0 0
  %1467 = vmatpush1.bf16.msra.mxu0 0
  %1468 = vmatprep.subr.bf16.mxu0 0
  %1469 = vmatpush1.bf16.msra.mxu0 0
  %1470 = vmatprep.subr.bf16.mxu0 0
  %1471 = vmatpush1.bf16.msra.mxu0 0
  %1472 = vmatprep.subr.bf16.mxu0 0
  %1473 = vmatpush1.bf16.msra.mxu0 0
  %1474 = vmatprep.subr.bf16.mxu0 0
  %1475 = vmatpush1.bf16.msra.mxu0 0
  %1476 = vmatprep.mubr.bf16.mxu0 0
  %1477 = vmatmul.mubr.bf16.gmra.mrb[0].mxu0 %v1433
  %v1478 = vpop.f32.mrb[0].mxu0
  %v1479 = vadd.f32 0.0, %v1478
  %v1480 = vpop.f32.mrb[0].mxu0
  %v1481 = vpop.f32.mrb[0].mxu0
  %v1482 = vadd.f32 0.0, %v1481
  %v1483 = vpop.f32.mrb[0].mxu0
  %1484 = vmatprep.mubr.bf16.mxu0 0
  %1485 = vmatmul.mubr.bf16.gmra.mrb[0].mxu0 %v1436
  %v1486 = vpop.f32.mrb[0].mxu0
  %v1487 = vadd.f32 0.0, %v1486
  %v1488 = vpop.f32.mrb[0].mxu0
  %v1489 = vpop.f32.mrb[0].mxu0
  %v1490 = vadd.f32 0.0, %v1489
  %v1491 = vpop.f32.mrb[0].mxu0
  %1492 = vmatprep.mubr.bf16.mxu0 0
  %1493 = vmatmul.mubr.bf16.gmra.mrb[0].mxu0 %v1439
  %v1494 = vpop.f32.mrb[0].mxu0
  %v1495 = vadd.f32 0.0, %v1494
  %v1496 = vpop.f32.mrb[0].mxu0
  %v1497 = vpop.f32.mrb[0].mxu0
  %v1498 = vadd.f32 0.0, %v1497
  %v1499 = vpop.f32.mrb[0].mxu0
  %1500 = vmatprep.mubr.bf16.mxu0 0
  %1501 = vmatmul.mubr.bf16.gmra.mrb[0].mxu0 %v1442
  %v1502 = vpop.f32.mrb[0].mxu0
  %v1503 = vadd.f32 0.0, %v1502
  %v1504 = vpop.f32.mrb[0].mxu0
  %v1505 = vpop.f32.mrb[0].mxu0
  %v1506 = vadd.f32 0.0, %v1505
  %v1507 = vpop.f32.mrb[0].mxu0
  %1508 = vdwg.mxu0
  %v1509 = vadd.f32 %v1336, %v1479
  %v1510 = vadd.f32 %v1339, %v1482
  %v1511 = vadd.f32 %v1344, %v1487
  %v1512 = vadd.f32 %v1347, %v1490
  %v1513 = vadd.f32 %v1352, %v1495
  %v1514 = vadd.f32 %v1355, %v1498
  %v1515 = vadd.f32 %v1360, %v1503
  %v1516 = vadd.f32 %v1363, %v1506
  %v1517 = vld [vmem:[%s13] sm:$0x1]
  %v1519 = vlaneseq
  %v1520 = vshrl.u32 %v1519, 7
  %v1521 = vsub.s32 0, %v1520
  %v1522 = vrot.slane %v1517, %v1521
  %v1524 = vadd.f32 %v1509, %v1522
  %v1525 = vadd.f32 %v1510, %v1522
  %v1526 = vadd.f32 %v1511, %v1522
  %v1527 = vadd.f32 %v1512, %v1522
  %v1528 = vadd.f32 %v1513, %v1522
  %v1529 = vadd.f32 %v1514, %v1522
  %v1530 = vadd.f32 %v1515, %v1522
  %v1531 = vadd.f32 %v1516, %v1522
  %v1532 = vpack.c.bf16 %v1525, %v1524
  %v1533 = vpack.c.bf16 %v1527, %v1526
  %v1534 = vpack.c.bf16 %v1529, %v1528
  %v1535 = vpack.c.bf16 %v1531, %v1530
  %v1536 = vld [vmem:[%s14] sm:$0xf]
  %v1537 = vld [vmem:[%s14 + $0x4] sm:$0xf]
  %v1538 = vld [vmem:[%s15] sm:$0x1]
  %v1540 = vlaneseq
  %v1541 = vshrl.u32 %v1540, 7
  %v1542 = vsub.s32 0, %v1541
  %v1543 = vrot.slane %v1538, %v1542
  %v1547 = vunpack.c.l.b16 %v1536
  %v1548 = vunpack.c.l.b16 %v1537
  %v1549 = vpack.c.b16 %v1548, %v1547
  %v1552 = vsel %vm114, %v1532, 0
  %v1555 = vsel %vm114, %v1533, 0
  %v1558 = vsel %vm114, %v1534, 0
  %v1561 = vsel %vm114, %v1535, 0
  %1563 = vmatprep.subr.bf16.mxu0 0
  %1564 = vmatpush1.bf16.msra.mxu0 %v1549
  %1565 = vmatprep.subr.bf16.mxu0 0
  %1566 = vmatpush1.bf16.msra.mxu0 0
  %1567 = vmatprep.subr.bf16.mxu0 0
  %1568 = vmatpush1.bf16.msra.mxu0 0
  %1569 = vmatprep.subr.bf16.mxu0 0
  %1570 = vmatpush1.bf16.msra.mxu0 0
  %1571 = vmatprep.subr.bf16.mxu0 0
  %1572 = vmatpush1.bf16.msra.mxu0 0
  %1573 = vmatprep.subr.bf16.mxu0 0
  %1574 = vmatpush1.bf16.msra.mxu0 0
  %1575 = vmatprep.subr.bf16.mxu0 0
  %1576 = vmatpush1.bf16.msra.mxu0 0
  %1577 = vmatprep.subr.bf16.mxu0 0
  %1578 = vmatpush1.bf16.msra.mxu0 0
  %1579 = vmatprep.subr.bf16.mxu0 0
  %1580 = vmatpush1.bf16.msra.mxu0 0
  %1581 = vmatprep.subr.bf16.mxu0 0
  %1582 = vmatpush1.bf16.msra.mxu0 0
  %1583 = vmatprep.subr.bf16.mxu0 0
  %1584 = vmatpush1.bf16.msra.mxu0 0
  %1585 = vmatprep.subr.bf16.mxu0 0
  %1586 = vmatpush1.bf16.msra.mxu0 0
  %1587 = vmatprep.subr.bf16.mxu0 0
  %1588 = vmatpush1.bf16.msra.mxu0 0
  %1589 = vmatprep.subr.bf16.mxu0 0
  %1590 = vmatpush1.bf16.msra.mxu0 0
  %1591 = vmatprep.subr.bf16.mxu0 0
  %1592 = vmatpush1.bf16.msra.mxu0 0
  %1593 = vmatprep.subr.bf16.mxu0 0
  %1594 = vmatpush1.bf16.msra.mxu0 0
  %1595 = vmatprep.mubr.bf16.mxu0 0
  %1596 = vmatmul.mubr.bf16.gmra.mrb[0].mxu0 %v1552
  %v1597 = vpop.f32.mrb[0].mxu0
  %v1598 = vadd.f32 %v1543, %v1597
  %v1599 = vpop.f32.mrb[0].mxu0
  %v1600 = vpop.f32.mrb[0].mxu0
  %v1601 = vadd.f32 %v1543, %v1600
  %v1602 = vpop.f32.mrb[0].mxu0
  %1603 = vmatprep.mubr.bf16.mxu0 0
  %1604 = vmatmul.mubr.bf16.gmra.mrb[0].mxu0 %v1555
  %v1605 = vpop.f32.mrb[0].mxu0
  %v1606 = vadd.f32 %v1543, %v1605
  %v1607 = vpop.f32.mrb[0].mxu0
  %v1608 = vpop.f32.mrb[0].mxu0
  %v1609 = vadd.f32 %v1543, %v1608
  %v1610 = vpop.f32.mrb[0].mxu0
  %1611 = vmatprep.mubr.bf16.mxu0 0
  %1612 = vmatmul.mubr.bf16.gmra.mrb[0].mxu0 %v1558
  %v1613 = vpop.f32.mrb[0].mxu0
  %v1614 = vadd.f32 %v1543, %v1613
  %v1615 = vpop.f32.mrb[0].mxu0
  %v1616 = vpop.f32.mrb[0].mxu0
  %v1617 = vadd.f32 %v1543, %v1616
  %v1618 = vpop.f32.mrb[0].mxu0
  %1619 = vmatprep.mubr.bf16.mxu0 0
  %1620 = vmatmul.mubr.bf16.gmra.mrb[0].mxu0 %v1561
  %v1621 = vpop.f32.mrb[0].mxu0
  %v1622 = vadd.f32 %v1543, %v1621
  %v1623 = vpop.f32.mrb[0].mxu0
  %v1624 = vpop.f32.mrb[0].mxu0
  %v1625 = vadd.f32 %v1543, %v1624
  %v1626 = vpop.f32.mrb[0].mxu0
  %1627 = vdwg.mxu0
  %v1628 = vadd.f32 %v1524, %v1598
  %v1629 = vadd.f32 %v1525, %v1601
  %v1630 = vadd.f32 %v1526, %v1606
  %v1631 = vadd.f32 %v1527, %v1609
  %v1632 = vadd.f32 %v1528, %v1614
  %v1633 = vadd.f32 %v1529, %v1617
  %v1634 = vadd.f32 %v1530, %v1622
  %v1635 = vadd.f32 %v1531, %v1625
  %1636 = vst.msk [vmem:[%s16] sm:$0xff] %vm114, %v1628
  %1637 = vst.msk [vmem:[%s16 + $0x8] sm:$0xff] %vm114, %v1629
  %1638 = vst.msk [vmem:[%s16 + $0x10] sm:$0xff] %vm114, %v1630
  %1639 = vst.msk [vmem:[%s16 + $0x18] sm:$0xff] %vm114, %v1631
  %1640 = vst.msk [vmem:[%s16 + $0x20] sm:$0xff] %vm114, %v1632
  %1641 = vst.msk [vmem:[%s16 + $0x28] sm:$0xff] %vm114, %v1633
  %1642 = vst.msk [vmem:[%s16 + $0x30] sm:$0xff] %vm114, %v1634
  %1643 = vst.msk [vmem:[%s16 + $0x38] sm:$0xff] %vm114, %v1635
  // Predicated region
  $region66: #{tpu_custom_call.1} parent=0 // pred_check
    _
  $region67: #{tpu_custom_call.1} parent=0 // pred_check_branch
    %1645 = sbr.rel (0) target = $region69
  $region68: #{tpu_custom_call.1} parent=0 // pred_region
    _
  $region69: #{tpu_custom_call.1} parent=0 // pred_fallthru
    _
  // Predicated region
  $region70: #{tpu_custom_call.1} parent=0 // pred_check
    _
  $region71: #{tpu_custom_call.1} parent=0 // pred_check_branch
    %1647 = sbr.rel (0) target = $region73
  $region72: #{tpu_custom_call.1} parent=0 // pred_region
    _
  $region73: #{tpu_custom_call.1} parent=0 // pred_fallthru
    _

</llo_original>
